<compile_context>
chip_gen: v7x
topology: tpu7x:2x2x1
jax: 0.10.0
libtpu: 0.0.40
codegen_flags: <defaults>
</compile_context>

<pallas_src>
import functools
import math

import jax
import jax.numpy as jnp
from jax.experimental import pallas as pl
from jax.experimental.pallas import tpu as pltpu


_INV_SQRT2 = 1.0 / math.sqrt(2.0)


def _gelu_exact(x):
    # PyTorch nn.GELU() default = exact erf-based GELU.
    return 0.5 * x * (1.0 + jax.lax.erf(x * _INV_SQRT2))


def _round_up(x, m):
    return (x + m - 1) // m * m


# ----------------------------------------------------------------------------
# Kernel
# ----------------------------------------------------------------------------
def ffn_2heads_glu_kernel(x_ref, w12_ref, b12_ref, gamma_ref, beta_ref,
                          w3_ref, b3_ref, o_ref, *, hidden, hidden_p, eps=1e-5):
    # x tile is pre-cast to the weight/compute dtype (bf16 by default).
    x = x_ref[...]                                            # (tm, dim_p)
    w12 = w12_ref[...]                                        # (dim_p, 2*hidden_p)

    # --- fused two-head projection: one wide MXU matmul, f32 accumulation ----
    y = jnp.dot(x, w12, preferred_element_type=jnp.float32)
    y = y + b12_ref[...].astype(jnp.float32)                  # (tm, 2*hidden_p)
    x1 = y[:, :hidden_p]                                      # lane-aligned split
    x2 = y[:, hidden_p:]

    # --- symmetric GLU gating: x1*gelu(x2) + x2*gelu(x1) (f32) ---------------
    # Padded hidden columns are exactly zero (zero weight cols + zero bias).
    f = x1 * _gelu_exact(x2) + x2 * _gelu_exact(x1)           # (tm, hidden_p)

    # --- one-pass LayerNorm over the REAL hidden size (f32 sums) -------------
    inv_h = 1.0 / float(hidden)
    s1 = jnp.sum(f, axis=-1, keepdims=True)
    s2 = jnp.sum(f * f, axis=-1, keepdims=True)
    mu = s1 * inv_h
    var = jnp.maximum(s2 * inv_h - mu * mu, 0.0)
    fn = (f - mu) * jax.lax.rsqrt(var + eps)
    fn = fn * gamma_ref[...].astype(jnp.float32) + beta_ref[...].astype(jnp.float32)
    # (padded gamma/beta are zero -> padded fn columns are zero)

    # Dropout(p=0.0) is identity.

    # --- final projection hidden -> dim (bf16 operands, f32 accumulate) ------
    w3 = w3_ref[...]
    out = jnp.dot(fn.astype(w3.dtype), w3, preferred_element_type=jnp.float32)
    out = out + b3_ref[...].astype(jnp.float32)
    o_ref[...] = out.astype(o_ref.dtype)


# ----------------------------------------------------------------------------
# Host-side packing (done once, outside the forward path)
# ----------------------------------------------------------------------------
def pack_params(params, compute_dtype=jnp.bfloat16):
    """Fuse fc1|fc2, pad dim/hidden to multiples of 128, cast matmul weights."""
    w1, b1 = params["w1"], params["b1"]
    w2, b2 = params["w2"], params["b2"]
    gamma, beta = params["gamma"], params["beta"]
    w3, b3 = params["w3"], params["b3"]

    dim, hidden = w1.shape
    dim_p = _round_up(dim, 128)
    hidden_p = _round_up(hidden, 128)

    def pad2(a, r, c):
        return jnp.pad(a, ((0, r - a.shape[0]), (0, c - a.shape[1])))

    w12 = jnp.concatenate([pad2(w1, dim_p, hidden_p),
                           pad2(w2, dim_p, hidden_p)], axis=1)      # (dim_p, 2*hidden_p)
    b12 = jnp.concatenate([pad2(b1, 1, hidden_p),
                           pad2(b2, 1, hidden_p)], axis=1)          # (1, 2*hidden_p)

    return {
        "w12": w12.astype(compute_dtype),
        "b12": b12.astype(jnp.float32),
        "gamma": pad2(gamma, 1, hidden_p).astype(jnp.float32),
        "beta": pad2(beta, 1, hidden_p).astype(jnp.float32),
        "w3": pad2(w3, hidden_p, dim_p).astype(compute_dtype),
        "b3": pad2(b3, 1, dim_p).astype(jnp.float32),
        "dim": dim,
        "hidden": hidden,
        "dim_p": dim_p,
        "hidden_p": hidden_p,
        "compute_dtype": compute_dtype,
    }


# ----------------------------------------------------------------------------
# Forward wrapper
# ----------------------------------------------------------------------------
def feedforward_2heads_glu(x, packed, *, tm=256):
    """x: (..., dim). packed: output of pack_params(). Returns same shape/dtype as x."""
    dim, hidden = packed["dim"], packed["hidden"]
    dim_p, hidden_p = packed["dim_p"], packed["hidden_p"]
    cdt = packed["compute_dtype"]

    orig_shape = x.shape
    out_dtype = x.dtype
    x2d = x.reshape(-1, dim)
    rows = x2d.shape[0]

    if dim_p != dim:
        x2d = jnp.pad(x2d, ((0, 0), (0, dim_p - dim)))
    x2d = x2d.astype(cdt)  # bf16 row tiles: halves x DMA, matches MXU operand dtype.

    # Row tiling: 128-aligned tiles (MXU systolic rows); aim for >= 2 grid
    # steps so the "parallel" rows axis can shard across v7x's 2 TensorCores.
    tm = max(128, _round_up(int(tm), 128))
    tm_eff = min(tm, max(128, _round_up(pl.cdiv(rows, 2), 128)))
    rows_p = _round_up(rows, tm_eff)
    if rows_p != rows:
        x2d = jnp.pad(x2d, ((0, rows_p - rows), (0, 0)))
    grid = (rows_p // tm_eff,)

    kernel = functools.partial(ffn_2heads_glu_kernel, hidden=hidden, hidden_p=hidden_p)

    # ---- VMEM budget (generation-aware) & cost estimate ----------------------
    w_isz = jnp.dtype(cdt).itemsize
    o_isz = jnp.dtype(out_dtype).itemsize
    weight_bytes = int((packed["w12"].size + packed["w3"].size) * w_isz
                       + (packed["b12"].size + packed["gamma"].size
                          + packed["beta"].size + packed["b3"].size) * 4)
    tile_bytes = 2 * tm_eff * dim_p * (w_isz + o_isz)           # double-buffered x / out tiles
    interm_bytes = 5 * tm_eff * 2 * hidden_p * 4                # y/x1/x2/f/fn f32 temporaries
    needed = 2 * weight_bytes + tile_bytes + interm_bytes + (4 << 20)

    try:  # capacity-aware cap: ~54 MiB on v7x (64 MiB/TC), ~112 MiB on v5e/v6e (128 MiB)
        cap = int(pltpu.get_tpu_info().vmem_capacity_bytes)
    except Exception:
        cap = 64 * 2**20
    vmem_budget = (cap * 7) // 8                                # headroom for Mosaic scratch
    vmem_limit = int(min(vmem_budget, max(32 * 2**20, needed)))

    flops = int(2 * rows_p * dim_p * (2 * hidden_p)             # fused first matmul
                + 2 * rows_p * hidden_p * dim_p                 # final projection
                + 12 * rows_p * hidden_p)                       # GLU + LayerNorm elementwise
    bytes_accessed = int(rows_p * dim_p * (w_isz + o_isz) + weight_bytes)
    cost = pl.CostEstimate(flops=flops,
                           transcendentals=int(2 * rows_p * hidden_p),
                           bytes_accessed=bytes_accessed)

    def build(weight_mode):
        def wspec(a):
            # Grid-invariant, fully-resident weight block.
            if weight_mode is None:
                return pl.BlockSpec(a.shape, lambda i: (0, 0))
            return pl.BlockSpec(a.shape, lambda i: (0, 0), pipeline_mode=weight_mode)

        grid_spec = pltpu.PrefetchScalarGridSpec(
            num_scalar_prefetch=0,
            grid=grid,
            in_specs=[
                pl.BlockSpec((tm_eff, dim_p), lambda i: (i, 0)),   # x row tile
                wspec(packed["w12"]),
                wspec(packed["b12"]),
                wspec(packed["gamma"]),
                wspec(packed["beta"]),
                wspec(packed["w3"]),
                wspec(packed["b3"]),
            ],
            out_specs=pl.BlockSpec((tm_eff, dim_p), lambda i: (i, 0)),
        )
        return pl.pallas_call(
            kernel,
            out_shape=jax.ShapeDtypeStruct((rows_p, dim_p), out_dtype),
            grid_spec=grid_spec,
            compiler_params=pltpu.CompilerParams(
                dimension_semantics=("parallel",),
                vmem_limit_bytes=vmem_limit),
            cost_estimate=cost,
        )

    args = (x2d, packed["w12"], packed["b12"], packed["gamma"],
            packed["beta"], packed["w3"], packed["b3"])

    try:
        # Weights' block index never changes -> single-buffer them to halve
        # their VMEM residency (matters on v7x's 64 MiB/TC).
        out2d = build(pl.Buffered(1))(*args)
    except Exception:
        # Fallback: default (double) buffering if this JAX rejects Buffered(1).
        out2d = build(None)(*args)

    out2d = out2d[:rows, :dim]
    return out2d.reshape(orig_shape)


# ----------------------------------------------------------------------------
# Init + reference + test
# ----------------------------------------------------------------------------
def init_params(key, dim, hidden):
    """Deterministic PyTorch-Linear-style init (uniform +-1/sqrt(fan_in))."""
    ks = jax.random.split(key, 6)
    lim1 = 1.0 / math.sqrt(dim)
    lim3 = 1.0 / math.sqrt(hidden)
    return {
        # Stored as (in, out) so the kernel does x @ W (== PyTorch x @ W.T).
        "w1": jax.random.uniform(ks[0], (dim, hidden), jnp.float32, -lim1, lim1),
        "b1": jax.random.uniform(ks[1], (1, hidden), jnp.float32, -lim1, lim1),
        "w2": jax.random.uniform(ks[2], (dim, hidden), jnp.float32, -lim1, lim1),
        "b2": jax.random.uniform(ks[3], (1, hidden), jnp.float32, -lim1, lim1),
        "gamma": jnp.ones((1, hidden), jnp.float32),
        "beta": jnp.zeros((1, hidden), jnp.float32),
        "w3": jax.random.uniform(ks[4], (hidden, dim), jnp.float32, -lim3, lim3),
        "b3": jax.random.uniform(ks[5], (1, dim), jnp.float32, -lim3, lim3),
    }


def reference(x, p):
    """Pure-JAX f32 reference of the PyTorch forward."""
    x1 = x @ p["w1"] + p["b1"][0]
    x2 = x @ p["w2"] + p["b2"][0]
    f = x1 * _gelu_exact(x2) + x2 * _gelu_exact(x1)
    mu = jnp.mean(f, -1, keepdims=True)
    var = jnp.mean((f - mu) ** 2, -1, keepdims=True)
    fn = (f - mu) / jnp.sqrt(var + 1e-5) * p["gamma"][0] + p["beta"][0]
    return fn @ p["w3"] + p["b3"][0]


if __name__ == "__main__":
    batch, seq, dim, hidden = 2, 8, 32, 64
    key = jax.random.PRNGKey(0)
    kx, kp = jax.random.split(key)
    x = jax.random.normal(kx, (batch, seq, dim), jnp.float32)
    params = init_params(kp, dim, hidden)
    ref = reference(x, params)

    # f32 compute path: tight parity with the PyTorch/JAX reference.
    packed_f32 = pack_params(params, compute_dtype=jnp.float32)
    out_f32 = jax.block_until_ready(feedforward_2heads_glu(x, packed_f32, tm=256))
    assert out_f32.shape == x.shape
    assert float(jnp.max(jnp.abs(out_f32 - ref))) < 1e-4, "f32 path mismatch vs reference"

    # bf16 matmul path (MXU-native on v5e/v6e/v7x). Tolerance is deliberately
    # loosened: bf16 operands give ~1e-3..1e-2 level deviations vs exact f32.
    packed_bf16 = pack_params(params, compute_dtype=jnp.bfloat16)
    out_bf16 = jax.block_until_ready(feedforward_2heads_glu(x, packed_bf16, tm=256))
    assert out_bf16.shape == x.shape
    assert float(jnp.max(jnp.abs(out_bf16 - ref))) < 5e-2, "bf16 path mismatch vs reference"

    print("KERNEL_OK")
</pallas_src>

<mosaic_0001>
module attributes {stable_mosaic.version = 11 : i64} {
  func.func @ffn_2heads_glu_kernel(%arg0: i32, %arg1: memref<128x128xf32, #tpu.memory_space<vmem>>, %arg2: memref<128x256xf32, #tpu.memory_space<vmem>>, %arg3: memref<1x256xf32, #tpu.memory_space<vmem>>, %arg4: memref<1x128xf32, #tpu.memory_space<vmem>>, %arg5: memref<1x128xf32, #tpu.memory_space<vmem>>, %arg6: memref<128x128xf32, #tpu.memory_space<vmem>>, %arg7: memref<1x128xf32, #tpu.memory_space<vmem>>, %arg8: memref<128x128xf32, #tpu.memory_space<vmem>>) attributes {dimension_semantics = [#tpu.dimension_semantics<parallel>], iteration_bounds = array<i64: 1>, scalar_prefetch = 0 : i64, scratch_operands = 0 : i64, tpu.core_type = #tpu.core_type<tc>, window_params = [{transform_indices = @transform_0, window_bounds = array<i64: 128, 128>}, {pipeline_mode = #tpu.pipeline_mode<synchronous>, transform_indices = @transform_1, window_bounds = array<i64: 128, 256>}, {pipeline_mode = #tpu.pipeline_mode<synchronous>, transform_indices = @transform_2, window_bounds = array<i64: 1, 256>}, {pipeline_mode = #tpu.pipeline_mode<synchronous>, transform_indices = @transform_3, window_bounds = array<i64: 1, 128>}, {pipeline_mode = #tpu.pipeline_mode<synchronous>, transform_indices = @transform_4, window_bounds = array<i64: 1, 128>}, {pipeline_mode = #tpu.pipeline_mode<synchronous>, transform_indices = @transform_5, window_bounds = array<i64: 128, 128>}, {pipeline_mode = #tpu.pipeline_mode<synchronous>, transform_indices = @transform_6, window_bounds = array<i64: 1, 128>}, {transform_indices = @transform_7, window_bounds = array<i64: 128, 128>}]} {
    %c0 = arith.constant 0 : index
    %c0_0 = arith.constant 0 : index
    %0 = vector.load %arg1[%c0, %c0_0] : memref<128x128xf32, #tpu.memory_space<vmem>>, vector<128x128xf32>
    %c0_1 = arith.constant 0 : index
    %c0_2 = arith.constant 0 : index
    %1 = vector.load %arg2[%c0_1, %c0_2] : memref<128x256xf32, #tpu.memory_space<vmem>>, vector<128x256xf32>
    %cst = arith.constant dense<0.000000e+00> : vector<128x256xf32>
    %2 = tpu.matmul %0, %1, %cst {dimension_numbers = #tpu.dot_dimension_numbers<[1], [0], [0], [1], [0, 0, 1, 1], [], []>} : vector<128x128xf32>, vector<128x256xf32>, vector<128x256xf32> -> vector<128x256xf32>
    %c0_3 = arith.constant 0 : index
    %c0_4 = arith.constant 0 : index
    %3 = vector.load %arg3[%c0_3, %c0_4] : memref<1x256xf32, #tpu.memory_space<vmem>>, vector<1x256xf32>
    %4 = vector.broadcast %3 : vector<1x256xf32> to vector<128x256xf32>
    %5 = arith.addf %2, %4 : vector<128x256xf32>
    %6 = vector.extract_strided_slice %5 {offsets = [0, 0], sizes = [128, 128], strides = [1, 1]} : vector<128x256xf32> to vector<128x128xf32>
    %7 = vector.extract_strided_slice %5 {offsets = [0, 128], sizes = [128, 128], strides = [1, 1]} : vector<128x256xf32> to vector<128x128xf32>
    %cst_5 = arith.constant 5.000000e-01 : f32
    %8 = vector.broadcast %cst_5 : f32 to vector<128x128xf32>
    %9 = arith.mulf %8, %7 : vector<128x128xf32>
    %cst_6 = arith.constant 0.707106769 : f32
    %10 = vector.broadcast %cst_6 : f32 to vector<128x128xf32>
    %11 = arith.mulf %7, %10 : vector<128x128xf32>
    %12 = math.erf %11 : vector<128x128xf32>
    %cst_7 = arith.constant 1.000000e+00 : f32
    %13 = vector.broadcast %cst_7 : f32 to vector<128x128xf32>
    %14 = arith.addf %13, %12 : vector<128x128xf32>
    %15 = arith.mulf %9, %14 : vector<128x128xf32>
    %16 = arith.mulf %6, %15 : vector<128x128xf32>
    %cst_8 = arith.constant 5.000000e-01 : f32
    %17 = vector.broadcast %cst_8 : f32 to vector<128x128xf32>
    %18 = arith.mulf %17, %6 : vector<128x128xf32>
    %cst_9 = arith.constant 0.707106769 : f32
    %19 = vector.broadcast %cst_9 : f32 to vector<128x128xf32>
    %20 = arith.mulf %6, %19 : vector<128x128xf32>
    %21 = math.erf %20 : vector<128x128xf32>
    %cst_10 = arith.constant 1.000000e+00 : f32
    %22 = vector.broadcast %cst_10 : f32 to vector<128x128xf32>
    %23 = arith.addf %22, %21 : vector<128x128xf32>
    %24 = arith.mulf %18, %23 : vector<128x128xf32>
    %25 = arith.mulf %7, %24 : vector<128x128xf32>
    %26 = arith.addf %16, %25 : vector<128x128xf32>
    %cst_11 = arith.constant dense<0.000000e+00> : vector<128xf32>
    %27 = vector.multi_reduction <add>, %26, %cst_11 [1] : vector<128x128xf32> to vector<128xf32>
    %28 = vector.shape_cast %27 : vector<128xf32> to vector<128x1xf32>
    %29 = arith.mulf %26, %26 : vector<128x128xf32>
    %cst_12 = arith.constant dense<0.000000e+00> : vector<128xf32>
    %30 = vector.multi_reduction <add>, %29, %cst_12 [1] : vector<128x128xf32> to vector<128xf32>
    %31 = vector.shape_cast %30 : vector<128xf32> to vector<128x1xf32>
    %cst_13 = arith.constant 1.562500e-02 : f32
    %32 = vector.broadcast %cst_13 : f32 to vector<128x1xf32>
    %33 = arith.mulf %28, %32 : vector<128x1xf32>
    %cst_14 = arith.constant 1.562500e-02 : f32
    %34 = vector.broadcast %cst_14 : f32 to vector<128x1xf32>
    %35 = arith.mulf %31, %34 : vector<128x1xf32>
    %36 = arith.mulf %33, %33 : vector<128x1xf32>
    %37 = arith.subf %35, %36 : vector<128x1xf32>
    %cst_15 = arith.constant 0.000000e+00 : f32
    %38 = vector.broadcast %cst_15 : f32 to vector<128x1xf32>
    %39 = arith.maximumf %37, %38 : vector<128x1xf32>
    %40 = vector.broadcast %33 : vector<128x1xf32> to vector<128x128xf32>
    %41 = arith.subf %26, %40 : vector<128x128xf32>
    %cst_16 = arith.constant 9.99999974E-6 : f32
    %42 = vector.broadcast %cst_16 : f32 to vector<128x1xf32>
    %43 = arith.addf %39, %42 : vector<128x1xf32>
    %44 = math.rsqrt %43 : vector<128x1xf32>
    %45 = vector.broadcast %44 : vector<128x1xf32> to vector<128x128xf32>
    %46 = arith.mulf %41, %45 : vector<128x128xf32>
    %c0_17 = arith.constant 0 : index
    %c0_18 = arith.constant 0 : index
    %47 = vector.load %arg4[%c0_17, %c0_18] : memref<1x128xf32, #tpu.memory_space<vmem>>, vector<1x128xf32>
    %48 = vector.broadcast %47 : vector<1x128xf32> to vector<128x128xf32>
    %49 = arith.mulf %46, %48 : vector<128x128xf32>
    %c0_19 = arith.constant 0 : index
    %c0_20 = arith.constant 0 : index
    %50 = vector.load %arg5[%c0_19, %c0_20] : memref<1x128xf32, #tpu.memory_space<vmem>>, vector<1x128xf32>
    %51 = vector.broadcast %50 : vector<1x128xf32> to vector<128x128xf32>
    %52 = arith.addf %49, %51 : vector<128x128xf32>
    %c0_21 = arith.constant 0 : index
    %c0_22 = arith.constant 0 : index
    %53 = vector.load %arg6[%c0_21, %c0_22] : memref<128x128xf32, #tpu.memory_space<vmem>>, vector<128x128xf32>
    %cst_23 = arith.constant dense<0.000000e+00> : vector<128x128xf32>
    %54 = tpu.matmul %52, %53, %cst_23 {dimension_numbers = #tpu.dot_dimension_numbers<[1], [0], [0], [1], [0, 0, 1, 1], [], []>} : vector<128x128xf32>, vector<128x128xf32>, vector<128x128xf32> -> vector<128x128xf32>
    %c0_24 = arith.constant 0 : index
    %c0_25 = arith.constant 0 : index
    %55 = vector.load %arg7[%c0_24, %c0_25] : memref<1x128xf32, #tpu.memory_space<vmem>>, vector<1x128xf32>
    %56 = vector.broadcast %55 : vector<1x128xf32> to vector<128x128xf32>
    %57 = arith.addf %54, %56 : vector<128x128xf32>
    %c0_26 = arith.constant 0 : index
    %c0_27 = arith.constant 0 : index
    %58 = vector.load %arg8[%c0_26, %c0_27] : memref<128x128xf32, #tpu.memory_space<vmem>>, vector<128x128xf32>
    tpu.vector_store %arg8[%c0_26, %c0_27], %57 {strides = array<i32>} : memref<128x128xf32, #tpu.memory_space<vmem>>, vector<128x128xf32>,
    return
  }
  func.func @transform_0(%arg0: i32) -> (i32, i32) {
    %c0_i32 = arith.constant 0 : i32
    %c0_i32_0 = arith.constant 0 : i32
    return %arg0, %c0_i32 : i32, i32
  }
  func.func @transform_1(%arg0: i32) -> (i32, i32) {
    %c0_i32 = arith.constant 0 : i32
    %c0_i32_0 = arith.constant 0 : i32
    %c0_i32_1 = arith.constant 0 : i32
    return %c0_i32, %c0_i32_0 : i32, i32
  }
  func.func @transform_2(%arg0: i32) -> (i32, i32) {
    %c0_i32 = arith.constant 0 : i32
    %c0_i32_0 = arith.constant 0 : i32
    %c0_i32_1 = arith.constant 0 : i32
    return %c0_i32, %c0_i32_0 : i32, i32
  }
  func.func @transform_3(%arg0: i32) -> (i32, i32) {
    %c0_i32 = arith.constant 0 : i32
    %c0_i32_0 = arith.constant 0 : i32
    %c0_i32_1 = arith.constant 0 : i32
    return %c0_i32, %c0_i32_0 : i32, i32
  }
  func.func @transform_4(%arg0: i32) -> (i32, i32) {
    %c0_i32 = arith.constant 0 : i32
    %c0_i32_0 = arith.constant 0 : i32
    %c0_i32_1 = arith.constant 0 : i32
    return %c0_i32, %c0_i32_0 : i32, i32
  }
  func.func @transform_5(%arg0: i32) -> (i32, i32) {
    %c0_i32 = arith.constant 0 : i32
    %c0_i32_0 = arith.constant 0 : i32
    %c0_i32_1 = arith.constant 0 : i32
    return %c0_i32, %c0_i32_0 : i32, i32
  }
  func.func @transform_6(%arg0: i32) -> (i32, i32) {
    %c0_i32 = arith.constant 0 : i32
    %c0_i32_0 = arith.constant 0 : i32
    %c0_i32_1 = arith.constant 0 : i32
    return %c0_i32, %c0_i32_0 : i32, i32
  }
  func.func @transform_7(%arg0: i32) -> (i32, i32) {
    %c0_i32 = arith.constant 0 : i32
    %c0_i32_0 = arith.constant 0 : i32
    return %arg0, %c0_i32 : i32, i32
  }
}

module attributes {stable_mosaic.version = 11 : i64} {
  func.func @ffn_2heads_glu_kernel(%arg0: i32, %arg1: memref<128x128xf32, #tpu.memory_space<vmem>>, %arg2: memref<128x256xf32, #tpu.memory_space<vmem>>, %arg3: memref<1x256xf32, #tpu.memory_space<vmem>>, %arg4: memref<1x128xf32, #tpu.memory_space<vmem>>, %arg5: memref<1x128xf32, #tpu.memory_space<vmem>>, %arg6: memref<128x128xf32, #tpu.memory_space<vmem>>, %arg7: memref<1x128xf32, #tpu.memory_space<vmem>>, %arg8: memref<128x128xf32, #tpu.memory_space<vmem>>) attributes {dimension_semantics = [#tpu.dimension_semantics<parallel>], iteration_bounds = array<i64: 1>, scalar_prefetch = 0 : i64, scratch_operands = 0 : i64, tpu.core_type = #tpu.core_type<tc>, window_params = [{transform_indices = @transform_0, window_bounds = array<i64: 128, 128>}, {pipeline_mode = #tpu.pipeline_mode<synchronous>, transform_indices = @transform_1, window_bounds = array<i64: 128, 256>}, {pipeline_mode = #tpu.pipeline_mode<synchronous>, transform_indices = @transform_2, window_bounds = array<i64: 1, 256>}, {pipeline_mode = #tpu.pipeline_mode<synchronous>, transform_indices = @transform_3, window_bounds = array<i64: 1, 128>}, {pipeline_mode = #tpu.pipeline_mode<synchronous>, transform_indices = @transform_4, window_bounds = array<i64: 1, 128>}, {pipeline_mode = #tpu.pipeline_mode<synchronous>, transform_indices = @transform_5, window_bounds = array<i64: 128, 128>}, {pipeline_mode = #tpu.pipeline_mode<synchronous>, transform_indices = @transform_6, window_bounds = array<i64: 1, 128>}, {transform_indices = @transform_7, window_bounds = array<i64: 128, 128>}]} {
    %c0 = arith.constant 0 : index
    %c0_0 = arith.constant 0 : index
    %0 = vector.load %arg1[%c0, %c0_0] : memref<128x128xf32, #tpu.memory_space<vmem>>, vector<128x128xf32>
    %c0_1 = arith.constant 0 : index
    %c0_2 = arith.constant 0 : index
    %1 = vector.load %arg2[%c0_1, %c0_2] : memref<128x256xf32, #tpu.memory_space<vmem>>, vector<128x256xf32>
    %cst = arith.constant dense<0.000000e+00> : vector<128x256xf32>
    %2 = tpu.matmul %0, %1, %cst {dimension_numbers = #tpu.dot_dimension_numbers<[1], [0], [0], [1], [0, 0, 1, 1], [], []>} : vector<128x128xf32>, vector<128x256xf32>, vector<128x256xf32> -> vector<128x256xf32>
    %c0_3 = arith.constant 0 : index
    %c0_4 = arith.constant 0 : index
    %3 = vector.load %arg3[%c0_3, %c0_4] : memref<1x256xf32, #tpu.memory_space<vmem>>, vector<1x256xf32>
    %4 = vector.broadcast %3 : vector<1x256xf32> to vector<128x256xf32>
    %5 = arith.addf %2, %4 : vector<128x256xf32>
    %6 = vector.extract_strided_slice %5 {offsets = [0, 0], sizes = [128, 128], strides = [1, 1]} : vector<128x256xf32> to vector<128x128xf32>
    %7 = vector.extract_strided_slice %5 {offsets = [0, 128], sizes = [128, 128], strides = [1, 1]} : vector<128x256xf32> to vector<128x128xf32>
    %cst_5 = arith.constant 5.000000e-01 : f32
    %8 = vector.broadcast %cst_5 : f32 to vector<128x128xf32>
    %9 = arith.mulf %8, %7 : vector<128x128xf32>
    %cst_6 = arith.constant 0.707106769 : f32
    %10 = vector.broadcast %cst_6 : f32 to vector<128x128xf32>
    %11 = arith.mulf %7, %10 : vector<128x128xf32>
    %12 = math.erf %11 : vector<128x128xf32>
    %cst_7 = arith.constant 1.000000e+00 : f32
    %13 = vector.broadcast %cst_7 : f32 to vector<128x128xf32>
    %14 = arith.addf %13, %12 : vector<128x128xf32>
    %15 = arith.mulf %9, %14 : vector<128x128xf32>
    %16 = arith.mulf %6, %15 : vector<128x128xf32>
    %cst_8 = arith.constant 5.000000e-01 : f32
    %17 = vector.broadcast %cst_8 : f32 to vector<128x128xf32>
    %18 = arith.mulf %17, %6 : vector<128x128xf32>
    %cst_9 = arith.constant 0.707106769 : f32
    %19 = vector.broadcast %cst_9 : f32 to vector<128x128xf32>
    %20 = arith.mulf %6, %19 : vector<128x128xf32>
    %21 = math.erf %20 : vector<128x128xf32>
    %cst_10 = arith.constant 1.000000e+00 : f32
    %22 = vector.broadcast %cst_10 : f32 to vector<128x128xf32>
    %23 = arith.addf %22, %21 : vector<128x128xf32>
    %24 = arith.mulf %18, %23 : vector<128x128xf32>
    %25 = arith.mulf %7, %24 : vector<128x128xf32>
    %26 = arith.addf %16, %25 : vector<128x128xf32>
    %cst_11 = arith.constant dense<0.000000e+00> : vector<128xf32>
    %27 = vector.multi_reduction <add>, %26, %cst_11 [1] : vector<128x128xf32> to vector<128xf32>
    %28 = vector.shape_cast %27 : vector<128xf32> to vector<128x1xf32>
    %29 = arith.mulf %26, %26 : vector<128x128xf32>
    %cst_12 = arith.constant dense<0.000000e+00> : vector<128xf32>
    %30 = vector.multi_reduction <add>, %29, %cst_12 [1] : vector<128x128xf32> to vector<128xf32>
    %31 = vector.shape_cast %30 : vector<128xf32> to vector<128x1xf32>
    %cst_13 = arith.constant 1.562500e-02 : f32
    %32 = vector.broadcast %cst_13 : f32 to vector<128x1xf32>
    %33 = arith.mulf %28, %32 : vector<128x1xf32>
    %cst_14 = arith.constant 1.562500e-02 : f32
    %34 = vector.broadcast %cst_14 : f32 to vector<128x1xf32>
    %35 = arith.mulf %31, %34 : vector<128x1xf32>
    %36 = arith.mulf %33, %33 : vector<128x1xf32>
    %37 = arith.subf %35, %36 : vector<128x1xf32>
    %cst_15 = arith.constant 0.000000e+00 : f32
    %38 = vector.broadcast %cst_15 : f32 to vector<128x1xf32>
    %39 = arith.maximumf %37, %38 : vector<128x1xf32>
    %40 = vector.broadcast %33 : vector<128x1xf32> to vector<128x128xf32>
    %41 = arith.subf %26, %40 : vector<128x128xf32>
    %cst_16 = arith.constant 9.99999974E-6 : f32
    %42 = vector.broadcast %cst_16 : f32 to vector<128x1xf32>
    %43 = arith.addf %39, %42 : vector<128x1xf32>
    %44 = math.rsqrt %43 : vector<128x1xf32>
    %45 = vector.broadcast %44 : vector<128x1xf32> to vector<128x128xf32>
    %46 = arith.mulf %41, %45 : vector<128x128xf32>
    %c0_17 = arith.constant 0 : index
    %c0_18 = arith.constant 0 : index
    %47 = vector.load %arg4[%c0_17, %c0_18] : memref<1x128xf32, #tpu.memory_space<vmem>>, vector<1x128xf32>
    %48 = vector.broadcast %47 : vector<1x128xf32> to vector<128x128xf32>
    %49 = arith.mulf %46, %48 : vector<128x128xf32>
    %c0_19 = arith.constant 0 : index
    %c0_20 = arith.constant 0 : index
    %50 = vector.load %arg5[%c0_19, %c0_20] : memref<1x128xf32, #tpu.memory_space<vmem>>, vector<1x128xf32>
    %51 = vector.broadcast %50 : vector<1x128xf32> to vector<128x128xf32>
    %52 = arith.addf %49, %51 : vector<128x128xf32>
    %c0_21 = arith.constant 0 : index
    %c0_22 = arith.constant 0 : index
    %53 = vector.load %arg6[%c0_21, %c0_22] : memref<128x128xf32, #tpu.memory_space<vmem>>, vector<128x128xf32>
    %cst_23 = arith.constant dense<0.000000e+00> : vector<128x128xf32>
    %54 = tpu.matmul %52, %53, %cst_23 {dimension_numbers = #tpu.dot_dimension_numbers<[1], [0], [0], [1], [0, 0, 1, 1], [], []>} : vector<128x128xf32>, vector<128x128xf32>, vector<128x128xf32> -> vector<128x128xf32>
    %c0_24 = arith.constant 0 : index
    %c0_25 = arith.constant 0 : index
    %55 = vector.load %arg7[%c0_24, %c0_25] : memref<1x128xf32, #tpu.memory_space<vmem>>, vector<1x128xf32>
    %56 = vector.broadcast %55 : vector<1x128xf32> to vector<128x128xf32>
    %57 = arith.addf %54, %56 : vector<128x128xf32>
    %c0_26 = arith.constant 0 : index
    %c0_27 = arith.constant 0 : index
    %58 = vector.load %arg8[%c0_26, %c0_27] : memref<128x128xf32, #tpu.memory_space<vmem>>, vector<128x128xf32>
    tpu.vector_store %arg8[%c0_26, %c0_27], %57 {strides = array<i32>} : memref<128x128xf32, #tpu.memory_space<vmem>>, vector<128x128xf32>,
    return
  }
  func.func @transform_0(%arg0: i32) -> (i32, i32) {
    %c0_i32 = arith.constant 0 : i32
    %c0_i32_0 = arith.constant 0 : i32
    return %arg0, %c0_i32 : i32, i32
  }
  func.func @transform_1(%arg0: i32) -> (i32, i32) {
    %c0_i32 = arith.constant 0 : i32
    %c0_i32_0 = arith.constant 0 : i32
    %c0_i32_1 = arith.constant 0 : i32
    return %c0_i32, %c0_i32_0 : i32, i32
  }
  func.func @transform_2(%arg0: i32) -> (i32, i32) {
    %c0_i32 = arith.constant 0 : i32
    %c0_i32_0 = arith.constant 0 : i32
    %c0_i32_1 = arith.constant 0 : i32
    return %c0_i32, %c0_i32_0 : i32, i32
  }
  func.func @transform_3(%arg0: i32) -> (i32, i32) {
    %c0_i32 = arith.constant 0 : i32
    %c0_i32_0 = arith.constant 0 : i32
    %c0_i32_1 = arith.constant 0 : i32
    return %c0_i32, %c0_i32_0 : i32, i32
  }
  func.func @transform_4(%arg0: i32) -> (i32, i32) {
    %c0_i32 = arith.constant 0 : i32
    %c0_i32_0 = arith.constant 0 : i32
    %c0_i32_1 = arith.constant 0 : i32
    return %c0_i32, %c0_i32_0 : i32, i32
  }
  func.func @transform_5(%arg0: i32) -> (i32, i32) {
    %c0_i32 = arith.constant 0 : i32
    %c0_i32_0 = arith.constant 0 : i32
    %c0_i32_1 = arith.constant 0 : i32
    return %c0_i32, %c0_i32_0 : i32, i32
  }
  func.func @transform_6(%arg0: i32) -> (i32, i32) {
    %c0_i32 = arith.constant 0 : i32
    %c0_i32_0 = arith.constant 0 : i32
    %c0_i32_1 = arith.constant 0 : i32
    return %c0_i32, %c0_i32_0 : i32, i32
  }
  func.func @transform_7(%arg0: i32) -> (i32, i32) {
    %c0_i32 = arith.constant 0 : i32
    %c0_i32_0 = arith.constant 0 : i32
    return %arg0, %c0_i32 : i32, i32
  }
}

</mosaic_0001>

<llo_original>
// kernel: tpu_custom_call.1
$region0: #{tpu_custom_call.1}
  #allocation0 [shape = 'u32[]', space=smem, size = 0x4, offset = 0x4, fixed_abs, tag = 'smem constant byte address 0x4 - core index']
  #allocation1 [shape = 'u32[144,128]{1,0:T(1,128)}', space=vmem, size = 0x12000, scoped, tag = 'internal scratch']
  %s0 = inlined_call_operand.hbm [shape: f32[128,128], index: 0, kind: input, shape index: {}]
  %s1 = inlined_call_operand.hbm [shape: f32[128,256], index: 1, kind: input, shape index: {}]
  %s2 = inlined_call_operand.vmem [shape: f32[1,256], index: 2, kind: input, shape index: {}]
  %s3 = inlined_call_operand.vmem [shape: f32[1,128], index: 3, kind: input, shape index: {}]
  %s4 = inlined_call_operand.vmem [shape: f32[1,128], index: 4, kind: input, shape index: {}]
  %s5 = inlined_call_operand.hbm [shape: f32[128,128], index: 5, kind: input, shape index: {}]
  %s6 = inlined_call_operand.vmem [shape: f32[1,128], index: 6, kind: input, shape index: {}]
  %s7 = inlined_call_operand.hbm [shape: f32[128,128], index: 7, kind: output, shape index: {}]
  %s8 = sld [smem:[#allocation0]]
  $region50: #{tpu_custom_call.1} parent=0
    _
  %s10 = ssub.s32 1, %s8
  %s11 = scalar_select 0, %s10, %s8
  $region1: #{tpu_custom_call.1} parent=0
    #allocation2 [shape = 'u8[65536]{0}', space=vmem, size = 0x10000, scoped, tag = 'input window, operand 0, single buffered']
    #allocation3 [shape = 's32[1]{0}', space=sflag, size = 0x4, scoped, tag = 'scoped memory for tpu_custom_call.1']
    #allocation4 [shape = 's32[1]{0}', space=sflag, size = 0x4, scoped, tag = 'scoped memory for tpu_custom_call.1']
    #allocation5 [shape = 'u8[131072]{0}', space=vmem, size = 0x20000, scoped, tag = 'input window, operand 1, single buffered']
    #allocation6 [shape = 's32[1]{0}', space=sflag, size = 0x4, scoped, tag = 'scoped memory for tpu_custom_call.1']
    #allocation7 [shape = 'u8[65536]{0}', space=vmem, size = 0x10000, scoped, tag = 'input window, operand 5, single buffered']
    #allocation8 [shape = 'u8[65536]{0}', space=vmem, size = 0x10000, scoped, tag = 'output window, operand 0, single buffered']
    %12 = vsyncpa [#allocation3], 0
    %13 = vsyncpa [#allocation6], 0
    %14 = vsyncpa [#allocation4], 0
    // Predicated region
    $region2: #{tpu_custom_call.1} parent=1 // pred_check
      _
    $region3: #{tpu_custom_call.1} parent=1 // pred_check_branch
      %16 = sbr.rel (0) target = $region5
    $region4: #{tpu_custom_call.1} parent=1 // pred_region
      %s18 = ssub.s32 2048, 2048
      %19 = vsyncadd [#allocation3], %s18
      %s20 = sshll.u32 [#allocation2], 4
      %s21 = int_to_ptr.vmem [resolvable:$true] %s20
      %26 = dma.hbm_to_vmem [thread:$0]  %s0, 2048, %s21, [#allocation3], 128, 128, 8
    $region5: #{tpu_custom_call.1} parent=1 // pred_fallthru
      _
    // Predicated region
    $region6: #{tpu_custom_call.1} parent=1 // pred_check
      _
    $region7: #{tpu_custom_call.1} parent=1 // pred_check_branch
      %28 = sbr.rel (0) target = $region9
    $region8: #{tpu_custom_call.1} parent=1 // pred_region
      %s30 = ssub.s32 4096, 4096
      %31 = vsyncadd [#allocation6], %s30
      %s32 = sshll.u32 [#allocation5], 4
      %s33 = int_to_ptr.vmem [resolvable:$true] %s32
      %38 = dma.hbm_to_vmem [thread:$0]  %s1, 4096, %s33, [#allocation6], 256, 256, 16
    $region9: #{tpu_custom_call.1} parent=1 // pred_fallthru
      _
    // Predicated region
    $region10: #{tpu_custom_call.1} parent=1 // pred_check
      _
    $region11: #{tpu_custom_call.1} parent=1 // pred_check_branch
      %40 = sbr.rel (0) target = $region13
    $region12: #{tpu_custom_call.1} parent=1 // pred_region
      _
    $region13: #{tpu_custom_call.1} parent=1 // pred_fallthru
      _
    // Predicated region
    $region14: #{tpu_custom_call.1} parent=1 // pred_check
      _
    $region15: #{tpu_custom_call.1} parent=1 // pred_check_branch
      %42 = sbr.rel (0) target = $region17
    $region16: #{tpu_custom_call.1} parent=1 // pred_region
      _
    $region17: #{tpu_custom_call.1} parent=1 // pred_fallthru
      _
    // Predicated region
    $region18: #{tpu_custom_call.1} parent=1 // pred_check
      _
    $region19: #{tpu_custom_call.1} parent=1 // pred_check_branch
      %44 = sbr.rel (0) target = $region21
    $region20: #{tpu_custom_call.1} parent=1 // pred_region
      _
    $region21: #{tpu_custom_call.1} parent=1 // pred_fallthru
      _
    // Predicated region
    $region22: #{tpu_custom_call.1} parent=1 // pred_check
      _
    $region23: #{tpu_custom_call.1} parent=1 // pred_check_branch
      %46 = sbr.rel (0) target = $region25
    $region24: #{tpu_custom_call.1} parent=1 // pred_region
      %s48 = ssub.s32 2048, 2048
      %49 = vsyncadd [#allocation6], %s48
      %s50 = sshll.u32 [#allocation7], 4
      %s51 = int_to_ptr.vmem [resolvable:$true] %s50
      %56 = dma.hbm_to_vmem [thread:$0]  %s5, 2048, %s51, [#allocation6], 128, 128, 8
    $region25: #{tpu_custom_call.1} parent=1 // pred_fallthru
      _
    // Predicated region
    $region26: #{tpu_custom_call.1} parent=1 // pred_check
      _
    $region27: #{tpu_custom_call.1} parent=1 // pred_check_branch
      %58 = sbr.rel (0) target = $region29
    $region28: #{tpu_custom_call.1} parent=1 // pred_region
      _
    $region29: #{tpu_custom_call.1} parent=1 // pred_fallthru
      _
    // Predicated region
    $region30: #{tpu_custom_call.1} parent=1 // pred_check
      _
    $region31: #{tpu_custom_call.1} parent=1 // pred_check_branch
      %60 = sbr.rel (0) target = $region33
    $region32: #{tpu_custom_call.1} parent=1 // pred_region
      %61 = dma.done [#allocation3], 2048
    $region33: #{tpu_custom_call.1} parent=1 // pred_fallthru
      _
    // Predicated region
    $region34: #{tpu_custom_call.1} parent=1 // pred_check
      _
    $region35: #{tpu_custom_call.1} parent=1 // pred_check_branch
      %63 = sbr.rel (0) target = $region37
    $region36: #{tpu_custom_call.1} parent=1 // pred_region
      %64 = dma.done [#allocation6], 4096
    $region37: #{tpu_custom_call.1} parent=1 // pred_fallthru
      _
    // Predicated region
    $region38: #{tpu_custom_call.1} parent=1 // pred_check
      _
    $region39: #{tpu_custom_call.1} parent=1 // pred_check_branch
      %66 = sbr.rel (0) target = $region41
    $region40: #{tpu_custom_call.1} parent=1 // pred_region
      %67 = dma.done [#allocation6], 2048
    $region41: #{tpu_custom_call.1} parent=1 // pred_fallthru
      _
    %v68 = vld [vmem:[#allocation2] sm:$0xff]
    %v69 = vld [vmem:[#allocation2 + $0x8] sm:$0xff]
    %v70 = vld [vmem:[#allocation2 + $0x10] sm:$0xff]
    %v71 = vld [vmem:[#allocation2 + $0x18] sm:$0xff]
    %v72 = vld [vmem:[#allocation2 + $0x20] sm:$0xff]
    %v73 = vld [vmem:[#allocation2 + $0x28] sm:$0xff]
    %v74 = vld [vmem:[#allocation2 + $0x30] sm:$0xff]
    %v75 = vld [vmem:[#allocation2 + $0x38] sm:$0xff]
    %v76 = vld [vmem:[#allocation2 + $0x40] sm:$0xff]
    %v77 = vld [vmem:[#allocation2 + $0x48] sm:$0xff]
    %v78 = vld [vmem:[#allocation2 + $0x50] sm:$0xff]
    %v79 = vld [vmem:[#allocation2 + $0x58] sm:$0xff]
    %v80 = vld [vmem:[#allocation2 + $0x60] sm:$0xff]
    %v81 = vld [vmem:[#allocation2 + $0x68] sm:$0xff]
    %v82 = vld [vmem:[#allocation2 + $0x70] sm:$0xff]
    %v83 = vld [vmem:[#allocation2 + $0x78] sm:$0xff]
    %v84 = vld [vmem:[#allocation5] sm:$0xff]
    %v85 = vld [vmem:[#allocation5 + $0x8] sm:$0xff]
    %v86 = vld [vmem:[#allocation5 + $0x10] sm:$0xff]
    %v87 = vld [vmem:[#allocation5 + $0x18] sm:$0xff]
    %v88 = vld [vmem:[#allocation5 + $0x20] sm:$0xff]
    %v89 = vld [vmem:[#allocation5 + $0x28] sm:$0xff]
    %v90 = vld [vmem:[#allocation5 + $0x30] sm:$0xff]
    %v91 = vld [vmem:[#allocation5 + $0x38] sm:$0xff]
    %v92 = vld [vmem:[#allocation5 + $0x40] sm:$0xff]
    %v93 = vld [vmem:[#allocation5 + $0x48] sm:$0xff]
    %v94 = vld [vmem:[#allocation5 + $0x50] sm:$0xff]
    %v95 = vld [vmem:[#allocation5 + $0x58] sm:$0xff]
    %v96 = vld [vmem:[#allocation5 + $0x60] sm:$0xff]
    %v97 = vld [vmem:[#allocation5 + $0x68] sm:$0xff]
    %v98 = vld [vmem:[#allocation5 + $0x70] sm:$0xff]
    %v99 = vld [vmem:[#allocation5 + $0x78] sm:$0xff]
    %v100 = vld [vmem:[#allocation5 + $0x80] sm:$0xff]
    %v101 = vld [vmem:[#allocation5 + $0x88] sm:$0xff]
    %v102 = vld [vmem:[#allocation5 + $0x90] sm:$0xff]
    %v103 = vld [vmem:[#allocation5 + $0x98] sm:$0xff]
    %v104 = vld [vmem:[#allocation5 + $0xa0] sm:$0xff]
    %v105 = vld [vmem:[#allocation5 + $0xa8] sm:$0xff]
    %v106 = vld [vmem:[#allocation5 + $0xb0] sm:$0xff]
    %v107 = vld [vmem:[#allocation5 + $0xb8] sm:$0xff]
    %v108 = vld [vmem:[#allocation5 + $0xc0] sm:$0xff]
    %v109 = vld [vmem:[#allocation5 + $0xc8] sm:$0xff]
    %v110 = vld [vmem:[#allocation5 + $0xd0] sm:$0xff]
    %v111 = vld [vmem:[#allocation5 + $0xd8] sm:$0xff]
    %v112 = vld [vmem:[#allocation5 + $0xe0] sm:$0xff]
    %v113 = vld [vmem:[#allocation5 + $0xe8] sm:$0xff]
    %v114 = vld [vmem:[#allocation5 + $0xf0] sm:$0xff]
    %v115 = vld [vmem:[#allocation5 + $0xf8] sm:$0xff]
    %v116 = vld [vmem:[%s2] sm:$0x3]
    %v118 = vlaneseq
    %v119 = vshrl.u32 %v118, 7
    %v120 = vsub.s32 0, %v119
    %v121 = vrot.slane %v116, %v120
    %v122 = vlaneseq
    %v123 = vshrl.u32 %v122, 7
    %v124 = vsub.s32 1, %v123
    %v125 = vrot.slane %v116, %v124
    %128 = vmatprep.subr.mxu0 %v85
    %129 = vmatpush1.msra.mxu0 %v84
    %130 = vmatprep.subr.mxu0 %v87
    %131 = vmatpush1.msra.mxu0 %v86
    %132 = vmatprep.subr.mxu0 %v89
    %133 = vmatpush1.msra.mxu0 %v88
    %134 = vmatprep.subr.mxu0 %v91
    %135 = vmatpush1.msra.mxu0 %v90
    %136 = vmatprep.subr.mxu0 %v93
    %137 = vmatpush1.msra.mxu0 %v92
    %138 = vmatprep.subr.mxu0 %v95
    %139 = vmatpush1.msra.mxu0 %v94
    %140 = vmatprep.subr.mxu0 %v97
    %141 = vmatpush1.msra.mxu0 %v96
    %142 = vmatprep.subr.mxu0 %v99
    %143 = vmatpush1.msra.mxu0 %v98
    %144 = vmatprep.subr.mxu0 %v101
    %145 = vmatpush1.msra.mxu0 %v100
    %146 = vmatprep.subr.mxu0 %v103
    %147 = vmatpush1.msra.mxu0 %v102
    %148 = vmatprep.subr.mxu0 %v105
    %149 = vmatpush1.msra.mxu0 %v104
    %150 = vmatprep.subr.mxu0 %v107
    %151 = vmatpush1.msra.mxu0 %v106
    %152 = vmatprep.subr.mxu0 %v109
    %153 = vmatpush1.msra.mxu0 %v108
    %154 = vmatprep.subr.mxu0 %v111
    %155 = vmatpush1.msra.mxu0 %v110
    %156 = vmatprep.subr.mxu0 %v113
    %157 = vmatpush1.msra.mxu0 %v112
    %158 = vmatprep.subr.mxu0 %v115
    %159 = vmatpush1.msra.mxu0 %v114
    %160 = vmatprep.subr.mxu0 0.0
    %161 = vmatpush1.msra.mxu0 0.0
    %162 = vmatprep.subr.mxu0 0.0
    %163 = vmatpush1.msra.mxu0 0.0
    %164 = vmatprep.subr.mxu0 0.0
    %165 = vmatpush1.msra.mxu0 0.0
    %166 = vmatprep.subr.mxu0 0.0
    %167 = vmatpush1.msra.mxu0 0.0
    %168 = vmatprep.subr.mxu0 0.0
    %169 = vmatpush1.msra.mxu0 0.0
    %170 = vmatprep.subr.mxu0 0.0
    %171 = vmatpush1.msra.mxu0 0.0
    %172 = vmatprep.subr.mxu0 0.0
    %173 = vmatpush1.msra.mxu0 0.0
    %174 = vmatprep.subr.mxu0 0.0
    %175 = vmatpush1.msra.mxu0 0.0
    %176 = vmatprep.subr.mxu0 0.0
    %177 = vmatpush1.msra.mxu0 0.0
    %178 = vmatprep.subr.mxu0 0.0
    %179 = vmatpush1.msra.mxu0 0.0
    %180 = vmatprep.subr.mxu0 0.0
    %181 = vmatpush1.msra.mxu0 0.0
    %182 = vmatprep.subr.mxu0 0.0
    %183 = vmatpush1.msra.mxu0 0.0
    %184 = vmatprep.subr.mxu0 0.0
    %185 = vmatpush1.msra.mxu0 0.0
    %186 = vmatprep.subr.mxu0 0.0
    %187 = vmatpush1.msra.mxu0 0.0
    %188 = vmatprep.subr.mxu0 0.0
    %189 = vmatpush1.msra.mxu0 0.0
    %190 = vmatprep.subr.mxu0 0.0
    %191 = vmatpush1.msra.mxu0 0.0
    %192 = vmatprep.mubr.f32.mxu0 0.0
    %193 = vmatmul.mubr.f32.gmra.mrb[0].mxu0 %v68
    %v194 = vpop.f32.mrb[0].mxu0
    %v195 = vadd.f32 %v121, %v194
    %v196 = vpop.f32.mrb[0].mxu0
    %v197 = vadd.f32 %v125, %v196
    %198 = vmatprep.mubr.f32.mxu0 0.0
    %199 = vmatmul.mubr.f32.gmra.mrb[0].mxu0 %v69
    %v200 = vpop.f32.mrb[0].mxu0
    %v201 = vadd.f32 %v121, %v200
    %v202 = vpop.f32.mrb[0].mxu0
    %v203 = vadd.f32 %v125, %v202
    %204 = vmatprep.mubr.f32.mxu0 0.0
    %205 = vmatmul.mubr.f32.gmra.mrb[0].mxu0 %v70
    %v206 = vpop.f32.mrb[0].mxu0
    %v207 = vadd.f32 %v121, %v206
    %v208 = vpop.f32.mrb[0].mxu0
    %v209 = vadd.f32 %v125, %v208
    %210 = vmatprep.mubr.f32.mxu0 0.0
    %211 = vmatmul.mubr.f32.gmra.mrb[0].mxu0 %v71
    %v212 = vpop.f32.mrb[0].mxu0
    %v213 = vadd.f32 %v121, %v212
    %v214 = vpop.f32.mrb[0].mxu0
    %v215 = vadd.f32 %v125, %v214
    %216 = vmatprep.mubr.f32.mxu0 0.0
    %217 = vmatmul.mubr.f32.gmra.mrb[0].mxu0 %v72
    %v218 = vpop.f32.mrb[0].mxu0
    %v219 = vadd.f32 %v121, %v218
    %v220 = vpop.f32.mrb[0].mxu0
    %v221 = vadd.f32 %v125, %v220
    %222 = vmatprep.mubr.f32.mxu0 0.0
    %223 = vmatmul.mubr.f32.gmra.mrb[0].mxu0 %v73
    %v224 = vpop.f32.mrb[0].mxu0
    %v225 = vadd.f32 %v121, %v224
    %v226 = vpop.f32.mrb[0].mxu0
    %v227 = vadd.f32 %v125, %v226
    %228 = vmatprep.mubr.f32.mxu0 0.0
    %229 = vmatmul.mubr.f32.gmra.mrb[0].mxu0 %v74
    %v230 = vpop.f32.mrb[0].mxu0
    %v231 = vadd.f32 %v121, %v230
    %v232 = vpop.f32.mrb[0].mxu0
    %v233 = vadd.f32 %v125, %v232
    %234 = vmatprep.mubr.f32.mxu0 0.0
    %235 = vmatmul.mubr.f32.gmra.mrb[0].mxu0 %v75
    %v236 = vpop.f32.mrb[0].mxu0
    %v237 = vadd.f32 %v121, %v236
    %v238 = vpop.f32.mrb[0].mxu0
    %v239 = vadd.f32 %v125, %v238
    %240 = vmatprep.mubr.f32.mxu0 0.0
    %241 = vmatmul.mubr.f32.gmra.mrb[0].mxu0 %v76
    %v242 = vpop.f32.mrb[0].mxu0
    %v243 = vadd.f32 %v121, %v242
    %v244 = vpop.f32.mrb[0].mxu0
    %v245 = vadd.f32 %v125, %v244
    %246 = vmatprep.mubr.f32.mxu0 0.0
    %247 = vmatmul.mubr.f32.gmra.mrb[0].mxu0 %v77
    %v248 = vpop.f32.mrb[0].mxu0
    %v249 = vadd.f32 %v121, %v248
    %v250 = vpop.f32.mrb[0].mxu0
    %v251 = vadd.f32 %v125, %v250
    %252 = vmatprep.mubr.f32.mxu0 0.0
    %253 = vmatmul.mubr.f32.gmra.mrb[0].mxu0 %v78
    %v254 = vpop.f32.mrb[0].mxu0
    %v255 = vadd.f32 %v121, %v254
    %v256 = vpop.f32.mrb[0].mxu0
    %v257 = vadd.f32 %v125, %v256
    %258 = vmatprep.mubr.f32.mxu0 0.0
    %259 = vmatmul.mubr.f32.gmra.mrb[0].mxu0 %v79
    %v260 = vpop.f32.mrb[0].mxu0
    %v261 = vadd.f32 %v121, %v260
    %v262 = vpop.f32.mrb[0].mxu0
    %v263 = vadd.f32 %v125, %v262
    %264 = vmatprep.mubr.f32.mxu0 0.0
    %265 = vmatmul.mubr.f32.gmra.mrb[0].mxu0 %v80
    %v266 = vpop.f32.mrb[0].mxu0
    %v267 = vadd.f32 %v121, %v266
    %v268 = vpop.f32.mrb[0].mxu0
    %v269 = vadd.f32 %v125, %v268
    %270 = vmatprep.mubr.f32.mxu0 0.0
    %271 = vmatmul.mubr.f32.gmra.mrb[0].mxu0 %v81
    %v272 = vpop.f32.mrb[0].mxu0
    %v273 = vadd.f32 %v121, %v272
    %v274 = vpop.f32.mrb[0].mxu0
    %v275 = vadd.f32 %v125, %v274
    %276 = vmatprep.mubr.f32.mxu0 0.0
    %277 = vmatmul.mubr.f32.gmra.mrb[0].mxu0 %v82
    %v278 = vpop.f32.mrb[0].mxu0
    %v279 = vadd.f32 %v121, %v278
    %v280 = vpop.f32.mrb[0].mxu0
    %v281 = vadd.f32 %v125, %v280
    %282 = vmatprep.mubr.f32.mxu0 0.0
    %283 = vmatmul.mubr.f32.gmra.mrb[0].mxu0 %v83
    %v284 = vpop.f32.mrb[0].mxu0
    %v285 = vadd.f32 %v121, %v284
    %v286 = vpop.f32.mrb[0].mxu0
    %v287 = vadd.f32 %v125, %v286
    %288 = vdwg.mxu0
    %v289 = vmul.f32 %v197, 0.5
    %v290 = vmul.f32 %v203, 0.5
    %v291 = vmul.f32 %v209, 0.5
    %v292 = vmul.f32 %v215, 0.5
    %v293 = vmul.f32 %v221, 0.5
    %v294 = vmul.f32 %v227, 0.5
    %v295 = vmul.f32 %v233, 0.5
    %v296 = vmul.f32 %v239, 0.5
    %v297 = vmul.f32 %v245, 0.5
    %v298 = vmul.f32 %v251, 0.5
    %v299 = vmul.f32 %v257, 0.5
    %v300 = vmul.f32 %v263, 0.5
    %v301 = vmul.f32 %v269, 0.5
    %v302 = vmul.f32 %v275, 0.5
    %v303 = vmul.f32 %v281, 0.5
    %v304 = vmul.f32 %v287, 0.5
    %v305 = vmul.f32 %v197, 0.70710677
    %v306 = vmul.f32 %v203, 0.70710677
    %v307 = vmul.f32 %v209, 0.70710677
    %v308 = vmul.f32 %v215, 0.70710677
    %v309 = vmul.f32 %v221, 0.70710677
    %v310 = vmul.f32 %v227, 0.70710677
    %v311 = vmul.f32 %v233, 0.70710677
    %v312 = vmul.f32 %v239, 0.70710677
    %v313 = vmul.f32 %v245, 0.70710677
    %v314 = vmul.f32 %v251, 0.70710677
    %v315 = vmul.f32 %v257, 0.70710677
    %v316 = vmul.f32 %v263, 0.70710677
    %v317 = vmul.f32 %v269, 0.70710677
    %v318 = vmul.f32 %v275, 0.70710677
    %v319 = vmul.f32 %v281, 0.70710677
    %v320 = vmul.f32 %v287, 0.70710677
    %v321 = verf.f32.pop %v305
    %v322 = verf.f32.pop %v306
    %v323 = verf.f32.pop %v307
    %v324 = verf.f32.pop %v308
    %v325 = verf.f32.pop %v309
    %v326 = verf.f32.pop %v310
    %v327 = verf.f32.pop %v311
    %v328 = verf.f32.pop %v312
    %v329 = verf.f32.pop %v313
    %v330 = verf.f32.pop %v314
    %v331 = verf.f32.pop %v315
    %v332 = verf.f32.pop %v316
    %v333 = verf.f32.pop %v317
    %v334 = verf.f32.pop %v318
    %v335 = verf.f32.pop %v319
    %v336 = verf.f32.pop %v320
    %v337 = vadd.f32 %v321, 1.0
    %v338 = vadd.f32 %v322, 1.0
    %v339 = vadd.f32 %v323, 1.0
    %v340 = vadd.f32 %v324, 1.0
    %v341 = vadd.f32 %v325, 1.0
    %v342 = vadd.f32 %v326, 1.0
    %v343 = vadd.f32 %v327, 1.0
    %v344 = vadd.f32 %v328, 1.0
    %v345 = vadd.f32 %v329, 1.0
    %v346 = vadd.f32 %v330, 1.0
    %v347 = vadd.f32 %v331, 1.0
    %v348 = vadd.f32 %v332, 1.0
    %v349 = vadd.f32 %v333, 1.0
    %v350 = vadd.f32 %v334, 1.0
    %v351 = vadd.f32 %v335, 1.0
    %v352 = vadd.f32 %v336, 1.0
    %v353 = vmul.f32 %v289, %v337
    %v354 = vmul.f32 %v290, %v338
    %v355 = vmul.f32 %v291, %v339
    %v356 = vmul.f32 %v292, %v340
    %v357 = vmul.f32 %v293, %v341
    %v358 = vmul.f32 %v294, %v342
    %v359 = vmul.f32 %v295, %v343
    %v360 = vmul.f32 %v296, %v344
    %v361 = vmul.f32 %v297, %v345
    %v362 = vmul.f32 %v298, %v346
    %v363 = vmul.f32 %v299, %v347
    %v364 = vmul.f32 %v300, %v348
    %v365 = vmul.f32 %v301, %v349
    %v366 = vmul.f32 %v302, %v350
    %v367 = vmul.f32 %v303, %v351
    %v368 = vmul.f32 %v304, %v352
    %v369 = vmul.f32 %v195, %v353
    %v370 = vmul.f32 %v201, %v354
    %v371 = vmul.f32 %v207, %v355
    %v372 = vmul.f32 %v213, %v356
    %v373 = vmul.f32 %v219, %v357
    %v374 = vmul.f32 %v225, %v358
    %v375 = vmul.f32 %v231, %v359
    %v376 = vmul.f32 %v237, %v360
    %v377 = vmul.f32 %v243, %v361
    %v378 = vmul.f32 %v249, %v362
    %v379 = vmul.f32 %v255, %v363
    %v380 = vmul.f32 %v261, %v364
    %v381 = vmul.f32 %v267, %v365
    %v382 = vmul.f32 %v273, %v366
    %v383 = vmul.f32 %v279, %v367
    %v384 = vmul.f32 %v285, %v368
    %v385 = vmul.f32 %v195, 0.5
    %v386 = vmul.f32 %v201, 0.5
    %v387 = vmul.f32 %v207, 0.5
    %v388 = vmul.f32 %v213, 0.5
    %v389 = vmul.f32 %v219, 0.5
    %v390 = vmul.f32 %v225, 0.5
    %v391 = vmul.f32 %v231, 0.5
    %v392 = vmul.f32 %v237, 0.5
    %v393 = vmul.f32 %v243, 0.5
    %v394 = vmul.f32 %v249, 0.5
    %v395 = vmul.f32 %v255, 0.5
    %v396 = vmul.f32 %v261, 0.5
    %v397 = vmul.f32 %v267, 0.5
    %v398 = vmul.f32 %v273, 0.5
    %v399 = vmul.f32 %v279, 0.5
    %v400 = vmul.f32 %v285, 0.5
    %v401 = vmul.f32 %v195, 0.70710677
    %v402 = vmul.f32 %v201, 0.70710677
    %v403 = vmul.f32 %v207, 0.70710677
    %v404 = vmul.f32 %v213, 0.70710677
    %v405 = vmul.f32 %v219, 0.70710677
    %v406 = vmul.f32 %v225, 0.70710677
    %v407 = vmul.f32 %v231, 0.70710677
    %v408 = vmul.f32 %v237, 0.70710677
    %v409 = vmul.f32 %v243, 0.70710677
    %v410 = vmul.f32 %v249, 0.70710677
    %v411 = vmul.f32 %v255, 0.70710677
    %v412 = vmul.f32 %v261, 0.70710677
    %v413 = vmul.f32 %v267, 0.70710677
    %v414 = vmul.f32 %v273, 0.70710677
    %v415 = vmul.f32 %v279, 0.70710677
    %v416 = vmul.f32 %v285, 0.70710677
    %v417 = verf.f32.pop %v401
    %v418 = verf.f32.pop %v402
    %v419 = verf.f32.pop %v403
    %v420 = verf.f32.pop %v404
    %v421 = verf.f32.pop %v405
    %v422 = verf.f32.pop %v406
    %v423 = verf.f32.pop %v407
    %v424 = verf.f32.pop %v408
    %v425 = verf.f32.pop %v409
    %v426 = verf.f32.pop %v410
    %v427 = verf.f32.pop %v411
    %v428 = verf.f32.pop %v412
    %v429 = verf.f32.pop %v413
    %v430 = verf.f32.pop %v414
    %v431 = verf.f32.pop %v415
    %v432 = verf.f32.pop %v416
    %v433 = vadd.f32 %v417, 1.0
    %v434 = vadd.f32 %v418, 1.0
    %v435 = vadd.f32 %v419, 1.0
    %v436 = vadd.f32 %v420, 1.0
    %v437 = vadd.f32 %v421, 1.0
    %v438 = vadd.f32 %v422, 1.0
    %v439 = vadd.f32 %v423, 1.0
    %v440 = vadd.f32 %v424, 1.0
    %v441 = vadd.f32 %v425, 1.0
    %v442 = vadd.f32 %v426, 1.0
    %v443 = vadd.f32 %v427, 1.0
    %v444 = vadd.f32 %v428, 1.0
    %v445 = vadd.f32 %v429, 1.0
    %v446 = vadd.f32 %v430, 1.0
    %v447 = vadd.f32 %v431, 1.0
    %v448 = vadd.f32 %v432, 1.0
    %v449 = vmul.f32 %v385, %v433
    %v450 = vmul.f32 %v386, %v434
    %v451 = vmul.f32 %v387, %v435
    %v452 = vmul.f32 %v388, %v436
    %v453 = vmul.f32 %v389, %v437
    %v454 = vmul.f32 %v390, %v438
    %v455 = vmul.f32 %v391, %v439
    %v456 = vmul.f32 %v392, %v440
    %v457 = vmul.f32 %v393, %v441
    %v458 = vmul.f32 %v394, %v442
    %v459 = vmul.f32 %v395, %v443
    %v460 = vmul.f32 %v396, %v444
    %v461 = vmul.f32 %v397, %v445
    %v462 = vmul.f32 %v398, %v446
    %v463 = vmul.f32 %v399, %v447
    %v464 = vmul.f32 %v400, %v448
    %v465 = vmul.f32 %v197, %v449
    %v466 = vmul.f32 %v203, %v450
    %v467 = vmul.f32 %v209, %v451
    %v468 = vmul.f32 %v215, %v452
    %v469 = vmul.f32 %v221, %v453
    %v470 = vmul.f32 %v227, %v454
    %v471 = vmul.f32 %v233, %v455
    %v472 = vmul.f32 %v239, %v456
    %v473 = vmul.f32 %v245, %v457
    %v474 = vmul.f32 %v251, %v458
    %v475 = vmul.f32 %v257, %v459
    %v476 = vmul.f32 %v263, %v460
    %v477 = vmul.f32 %v269, %v461
    %v478 = vmul.f32 %v275, %v462
    %v479 = vmul.f32 %v281, %v463
    %v480 = vmul.f32 %v287, %v464
    %v481 = vadd.f32 %v369, %v465
    %v482 = vadd.f32 %v370, %v466
    %v483 = vadd.f32 %v371, %v467
    %v484 = vadd.f32 %v372, %v468
    %v485 = vadd.f32 %v373, %v469
    %v486 = vadd.f32 %v374, %v470
    %v487 = vadd.f32 %v375, %v471
    %v488 = vadd.f32 %v376, %v472
    %v489 = vadd.f32 %v377, %v473
    %v490 = vadd.f32 %v378, %v474
    %v491 = vadd.f32 %v379, %v475
    %v492 = vadd.f32 %v380, %v476
    %v493 = vadd.f32 %v381, %v477
    %v494 = vadd.f32 %v382, %v478
    %v495 = vadd.f32 %v383, %v479
    %v496 = vadd.f32 %v384, %v480
    %497 = vadd.xlane.f32.xlu0 %v481
    %v498 = vpop.xlane.xlu0 %497
    %499 = vadd.xlane.f32.xlu0 %v482
    %v500 = vpop.xlane.xlu0 %499
    %501 = vadd.xlane.f32.xlu0 %v483
    %v502 = vpop.xlane.xlu0 %501
    %503 = vadd.xlane.f32.xlu0 %v484
    %v504 = vpop.xlane.xlu0 %503
    %505 = vadd.xlane.f32.xlu0 %v485
    %v506 = vpop.xlane.xlu0 %505
    %507 = vadd.xlane.f32.xlu0 %v486
    %v508 = vpop.xlane.xlu0 %507
    %509 = vadd.xlane.f32.xlu0 %v487
    %v510 = vpop.xlane.xlu0 %509
    %511 = vadd.xlane.f32.xlu0 %v488
    %v512 = vpop.xlane.xlu0 %511
    %513 = vadd.xlane.f32.xlu0 %v489
    %v514 = vpop.xlane.xlu0 %513
    %515 = vadd.xlane.f32.xlu0 %v490
    %v516 = vpop.xlane.xlu0 %515
    %517 = vadd.xlane.f32.xlu0 %v491
    %v518 = vpop.xlane.xlu0 %517
    %519 = vadd.xlane.f32.xlu0 %v492
    %v520 = vpop.xlane.xlu0 %519
    %521 = vadd.xlane.f32.xlu0 %v493
    %v522 = vpop.xlane.xlu0 %521
    %523 = vadd.xlane.f32.xlu0 %v494
    %v524 = vpop.xlane.xlu0 %523
    %525 = vadd.xlane.f32.xlu0 %v495
    %v526 = vpop.xlane.xlu0 %525
    %527 = vadd.xlane.f32.xlu0 %v496
    %v528 = vpop.xlane.xlu0 %527
    %v529 = vmul.f32 %v481, %v481
    %v530 = vmul.f32 %v482, %v482
    %v531 = vmul.f32 %v483, %v483
    %v532 = vmul.f32 %v484, %v484
    %v533 = vmul.f32 %v485, %v485
    %v534 = vmul.f32 %v486, %v486
    %v535 = vmul.f32 %v487, %v487
    %v536 = vmul.f32 %v488, %v488
    %v537 = vmul.f32 %v489, %v489
    %v538 = vmul.f32 %v490, %v490
    %v539 = vmul.f32 %v491, %v491
    %v540 = vmul.f32 %v492, %v492
    %v541 = vmul.f32 %v493, %v493
    %v542 = vmul.f32 %v494, %v494
    %v543 = vmul.f32 %v495, %v495
    %v544 = vmul.f32 %v496, %v496
    %545 = vadd.xlane.f32.xlu0 %v529
    %v546 = vpop.xlane.xlu0 %545
    %547 = vadd.xlane.f32.xlu0 %v530
    %v548 = vpop.xlane.xlu0 %547
    %549 = vadd.xlane.f32.xlu0 %v531
    %v550 = vpop.xlane.xlu0 %549
    %551 = vadd.xlane.f32.xlu0 %v532
    %v552 = vpop.xlane.xlu0 %551
    %553 = vadd.xlane.f32.xlu0 %v533
    %v554 = vpop.xlane.xlu0 %553
    %555 = vadd.xlane.f32.xlu0 %v534
    %v556 = vpop.xlane.xlu0 %555
    %557 = vadd.xlane.f32.xlu0 %v535
    %v558 = vpop.xlane.xlu0 %557
    %559 = vadd.xlane.f32.xlu0 %v536
    %v560 = vpop.xlane.xlu0 %559
    %561 = vadd.xlane.f32.xlu0 %v537
    %v562 = vpop.xlane.xlu0 %561
    %563 = vadd.xlane.f32.xlu0 %v538
    %v564 = vpop.xlane.xlu0 %563
    %565 = vadd.xlane.f32.xlu0 %v539
    %v566 = vpop.xlane.xlu0 %565
    %567 = vadd.xlane.f32.xlu0 %v540
    %v568 = vpop.xlane.xlu0 %567
    %569 = vadd.xlane.f32.xlu0 %v541
    %v570 = vpop.xlane.xlu0 %569
    %571 = vadd.xlane.f32.xlu0 %v542
    %v572 = vpop.xlane.xlu0 %571
    %573 = vadd.xlane.f32.xlu0 %v543
    %v574 = vpop.xlane.xlu0 %573
    %575 = vadd.xlane.f32.xlu0 %v544
    %v576 = vpop.xlane.xlu0 %575
    %v577 = vmul.f32 %v498, 0.015625
    %v578 = vmul.f32 %v500, 0.015625
    %v579 = vmul.f32 %v502, 0.015625
    %v580 = vmul.f32 %v504, 0.015625
    %v581 = vmul.f32 %v506, 0.015625
    %v582 = vmul.f32 %v508, 0.015625
    %v583 = vmul.f32 %v510, 0.015625
    %v584 = vmul.f32 %v512, 0.015625
    %v585 = vmul.f32 %v514, 0.015625
    %v586 = vmul.f32 %v516, 0.015625
    %v587 = vmul.f32 %v518, 0.015625
    %v588 = vmul.f32 %v520, 0.015625
    %v589 = vmul.f32 %v522, 0.015625
    %v590 = vmul.f32 %v524, 0.015625
    %v591 = vmul.f32 %v526, 0.015625
    %v592 = vmul.f32 %v528, 0.015625
    %v593 = vmul.f32 %v546, 0.015625
    %v594 = vmul.f32 %v548, 0.015625
    %v595 = vmul.f32 %v550, 0.015625
    %v596 = vmul.f32 %v552, 0.015625
    %v597 = vmul.f32 %v554, 0.015625
    %v598 = vmul.f32 %v556, 0.015625
    %v599 = vmul.f32 %v558, 0.015625
    %v600 = vmul.f32 %v560, 0.015625
    %v601 = vmul.f32 %v562, 0.015625
    %v602 = vmul.f32 %v564, 0.015625
    %v603 = vmul.f32 %v566, 0.015625
    %v604 = vmul.f32 %v568, 0.015625
    %v605 = vmul.f32 %v570, 0.015625
    %v606 = vmul.f32 %v572, 0.015625
    %v607 = vmul.f32 %v574, 0.015625
    %v608 = vmul.f32 %v576, 0.015625
    %v609 = vmul.f32 %v577, %v577
    %v610 = vmul.f32 %v578, %v578
    %v611 = vmul.f32 %v579, %v579
    %v612 = vmul.f32 %v580, %v580
    %v613 = vmul.f32 %v581, %v581
    %v614 = vmul.f32 %v582, %v582
    %v615 = vmul.f32 %v583, %v583
    %v616 = vmul.f32 %v584, %v584
    %v617 = vmul.f32 %v585, %v585
    %v618 = vmul.f32 %v586, %v586
    %v619 = vmul.f32 %v587, %v587
    %v620 = vmul.f32 %v588, %v588
    %v621 = vmul.f32 %v589, %v589
    %v622 = vmul.f32 %v590, %v590
    %v623 = vmul.f32 %v591, %v591
    %v624 = vmul.f32 %v592, %v592
    %v625 = vsub.f32 %v593, %v609
    %v626 = vsub.f32 %v594, %v610
    %v627 = vsub.f32 %v595, %v611
    %v628 = vsub.f32 %v596, %v612
    %v629 = vsub.f32 %v597, %v613
    %v630 = vsub.f32 %v598, %v614
    %v631 = vsub.f32 %v599, %v615
    %v632 = vsub.f32 %v600, %v616
    %v633 = vsub.f32 %v601, %v617
    %v634 = vsub.f32 %v602, %v618
    %v635 = vsub.f32 %v603, %v619
    %v636 = vsub.f32 %v604, %v620
    %v637 = vsub.f32 %v605, %v621
    %v638 = vsub.f32 %v606, %v622
    %v639 = vsub.f32 %v607, %v623
    %v640 = vsub.f32 %v608, %v624
    %v641 = vmax.f32 %v625, 0.0
    %v642 = vmax.f32 %v626, 0.0
    %v643 = vmax.f32 %v627, 0.0
    %v644 = vmax.f32 %v628, 0.0
    %v645 = vmax.f32 %v629, 0.0
    %v646 = vmax.f32 %v630, 0.0
    %v647 = vmax.f32 %v631, 0.0
    %v648 = vmax.f32 %v632, 0.0
    %v649 = vmax.f32 %v633, 0.0
    %v650 = vmax.f32 %v634, 0.0
    %v651 = vmax.f32 %v635, 0.0
    %v652 = vmax.f32 %v636, 0.0
    %v653 = vmax.f32 %v637, 0.0
    %v654 = vmax.f32 %v638, 0.0
    %v655 = vmax.f32 %v639, 0.0
    %v656 = vmax.f32 %v640, 0.0
    %v657 = vsub.f32 %v481, %v577
    %v658 = vsub.f32 %v482, %v578
    %v659 = vsub.f32 %v483, %v579
    %v660 = vsub.f32 %v484, %v580
    %v661 = vsub.f32 %v485, %v581
    %v662 = vsub.f32 %v486, %v582
    %v663 = vsub.f32 %v487, %v583
    %v664 = vsub.f32 %v488, %v584
    %v665 = vsub.f32 %v489, %v585
    %v666 = vsub.f32 %v490, %v586
    %v667 = vsub.f32 %v491, %v587
    %v668 = vsub.f32 %v492, %v588
    %v669 = vsub.f32 %v493, %v589
    %v670 = vsub.f32 %v494, %v590
    %v671 = vsub.f32 %v495, %v591
    %v672 = vsub.f32 %v496, %v592
    %v673 = vadd.f32 %v641, 1e-05
    %v674 = vadd.f32 %v642, 1e-05
    %v675 = vadd.f32 %v643, 1e-05
    %v676 = vadd.f32 %v644, 1e-05
    %v677 = vadd.f32 %v645, 1e-05
    %v678 = vadd.f32 %v646, 1e-05
    %v679 = vadd.f32 %v647, 1e-05
    %v680 = vadd.f32 %v648, 1e-05
    %v681 = vadd.f32 %v649, 1e-05
    %v682 = vadd.f32 %v650, 1e-05
    %v683 = vadd.f32 %v651, 1e-05
    %v684 = vadd.f32 %v652, 1e-05
    %v685 = vadd.f32 %v653, 1e-05
    %v686 = vadd.f32 %v654, 1e-05
    %v687 = vadd.f32 %v655, 1e-05
    %v688 = vadd.f32 %v656, 1e-05
    %v689 = vrsqrt.pop %v673
    %v690 = vrsqrt.pop %v674
    %v691 = vrsqrt.pop %v675
    %v692 = vrsqrt.pop %v676
    %v693 = vrsqrt.pop %v677
    %v694 = vrsqrt.pop %v678
    %v695 = vrsqrt.pop %v679
    %v696 = vrsqrt.pop %v680
    %v697 = vrsqrt.pop %v681
    %v698 = vrsqrt.pop %v682
    %v699 = vrsqrt.pop %v683
    %v700 = vrsqrt.pop %v684
    %v701 = vrsqrt.pop %v685
    %v702 = vrsqrt.pop %v686
    %v703 = vrsqrt.pop %v687
    %v704 = vrsqrt.pop %v688
    %v705 = vmul.f32 %v657, %v689
    %v706 = vmul.f32 %v658, %v690
    %v707 = vmul.f32 %v659, %v691
    %v708 = vmul.f32 %v660, %v692
    %v709 = vmul.f32 %v661, %v693
    %v710 = vmul.f32 %v662, %v694
    %v711 = vmul.f32 %v663, %v695
    %v712 = vmul.f32 %v664, %v696
    %v713 = vmul.f32 %v665, %v697
    %v714 = vmul.f32 %v666, %v698
    %v715 = vmul.f32 %v667, %v699
    %v716 = vmul.f32 %v668, %v700
    %v717 = vmul.f32 %v669, %v701
    %v718 = vmul.f32 %v670, %v702
    %v719 = vmul.f32 %v671, %v703
    %v720 = vmul.f32 %v672, %v704
    %v721 = vld [vmem:[%s3] sm:$0x1]
    %v723 = vlaneseq
    %v724 = vshrl.u32 %v723, 7
    %v725 = vsub.s32 0, %v724
    %v726 = vrot.slane %v721, %v725
    %v728 = vmul.f32 %v705, %v726
    %v729 = vmul.f32 %v706, %v726
    %v730 = vmul.f32 %v707, %v726
    %v731 = vmul.f32 %v708, %v726
    %v732 = vmul.f32 %v709, %v726
    %v733 = vmul.f32 %v710, %v726
    %v734 = vmul.f32 %v711, %v726
    %v735 = vmul.f32 %v712, %v726
    %v736 = vmul.f32 %v713, %v726
    %v737 = vmul.f32 %v714, %v726
    %v738 = vmul.f32 %v715, %v726
    %v739 = vmul.f32 %v716, %v726
    %v740 = vmul.f32 %v717, %v726
    %v741 = vmul.f32 %v718, %v726
    %v742 = vmul.f32 %v719, %v726
    %v743 = vmul.f32 %v720, %v726
    %v744 = vld [vmem:[%s4] sm:$0x1]
    %v746 = vlaneseq
    %v747 = vshrl.u32 %v746, 7
    %v748 = vsub.s32 0, %v747
    %v749 = vrot.slane %v744, %v748
    %v751 = vadd.f32 %v728, %v749
    %v752 = vadd.f32 %v729, %v749
    %v753 = vadd.f32 %v730, %v749
    %v754 = vadd.f32 %v731, %v749
    %v755 = vadd.f32 %v732, %v749
    %v756 = vadd.f32 %v733, %v749
    %v757 = vadd.f32 %v734, %v749
    %v758 = vadd.f32 %v735, %v749
    %v759 = vadd.f32 %v736, %v749
    %v760 = vadd.f32 %v737, %v749
    %v761 = vadd.f32 %v738, %v749
    %v762 = vadd.f32 %v739, %v749
    %v763 = vadd.f32 %v740, %v749
    %v764 = vadd.f32 %v741, %v749
    %v765 = vadd.f32 %v742, %v749
    %v766 = vadd.f32 %v743, %v749
    %v767 = vld [vmem:[#allocation7] sm:$0xff]
    %v768 = vld [vmem:[#allocation7 + $0x8] sm:$0xff]
    %v769 = vld [vmem:[#allocation7 + $0x10] sm:$0xff]
    %v770 = vld [vmem:[#allocation7 + $0x18] sm:$0xff]
    %v771 = vld [vmem:[#allocation7 + $0x20] sm:$0xff]
    %v772 = vld [vmem:[#allocation7 + $0x28] sm:$0xff]
    %v773 = vld [vmem:[#allocation7 + $0x30] sm:$0xff]
    %v774 = vld [vmem:[#allocation7 + $0x38] sm:$0xff]
    %v775 = vld [vmem:[#allocation7 + $0x40] sm:$0xff]
    %v776 = vld [vmem:[#allocation7 + $0x48] sm:$0xff]
    %v777 = vld [vmem:[#allocation7 + $0x50] sm:$0xff]
    %v778 = vld [vmem:[#allocation7 + $0x58] sm:$0xff]
    %v779 = vld [vmem:[#allocation7 + $0x60] sm:$0xff]
    %v780 = vld [vmem:[#allocation7 + $0x68] sm:$0xff]
    %v781 = vld [vmem:[#allocation7 + $0x70] sm:$0xff]
    %v782 = vld [vmem:[#allocation7 + $0x78] sm:$0xff]
    %v783 = vld [vmem:[%s6] sm:$0x1]
    %v785 = vlaneseq
    %v786 = vshrl.u32 %v785, 7
    %v787 = vsub.s32 0, %v786
    %v788 = vrot.slane %v783, %v787
    %790 = vmatprep.subr.mxu0 0.0
    %791 = vmatpush1.msra.mxu0 %v767
    %792 = vmatprep.subr.mxu0 0.0
    %793 = vmatpush1.msra.mxu0 %v768
    %794 = vmatprep.subr.mxu0 0.0
    %795 = vmatpush1.msra.mxu0 %v769
    %796 = vmatprep.subr.mxu0 0.0
    %797 = vmatpush1.msra.mxu0 %v770
    %798 = vmatprep.subr.mxu0 0.0
    %799 = vmatpush1.msra.mxu0 %v771
    %800 = vmatprep.subr.mxu0 0.0
    %801 = vmatpush1.msra.mxu0 %v772
    %802 = vmatprep.subr.mxu0 0.0
    %803 = vmatpush1.msra.mxu0 %v773
    %804 = vmatprep.subr.mxu0 0.0
    %805 = vmatpush1.msra.mxu0 %v774
    %806 = vmatprep.subr.mxu0 0.0
    %807 = vmatpush1.msra.mxu0 %v775
    %808 = vmatprep.subr.mxu0 0.0
    %809 = vmatpush1.msra.mxu0 %v776
    %810 = vmatprep.subr.mxu0 0.0
    %811 = vmatpush1.msra.mxu0 %v777
    %812 = vmatprep.subr.mxu0 0.0
    %813 = vmatpush1.msra.mxu0 %v778
    %814 = vmatprep.subr.mxu0 0.0
    %815 = vmatpush1.msra.mxu0 %v779
    %816 = vmatprep.subr.mxu0 0.0
    %817 = vmatpush1.msra.mxu0 %v780
    %818 = vmatprep.subr.mxu0 0.0
    %819 = vmatpush1.msra.mxu0 %v781
    %820 = vmatprep.subr.mxu0 0.0
    %821 = vmatpush1.msra.mxu0 %v782
    %822 = vmatprep.subr.mxu0 0.0
    %823 = vmatpush1.msra.mxu0 0.0
    %824 = vmatprep.subr.mxu0 0.0
    %825 = vmatpush1.msra.mxu0 0.0
    %826 = vmatprep.subr.mxu0 0.0
    %827 = vmatpush1.msra.mxu0 0.0
    %828 = vmatprep.subr.mxu0 0.0
    %829 = vmatpush1.msra.mxu0 0.0
    %830 = vmatprep.subr.mxu0 0.0
    %831 = vmatpush1.msra.mxu0 0.0
    %832 = vmatprep.subr.mxu0 0.0
    %833 = vmatpush1.msra.mxu0 0.0
    %834 = vmatprep.subr.mxu0 0.0
    %835 = vmatpush1.msra.mxu0 0.0
    %836 = vmatprep.subr.mxu0 0.0
    %837 = vmatpush1.msra.mxu0 0.0
    %838 = vmatprep.subr.mxu0 0.0
    %839 = vmatpush1.msra.mxu0 0.0
    %840 = vmatprep.subr.mxu0 0.0
    %841 = vmatpush1.msra.mxu0 0.0
    %842 = vmatprep.subr.mxu0 0.0
    %843 = vmatpush1.msra.mxu0 0.0
    %844 = vmatprep.subr.mxu0 0.0
    %845 = vmatpush1.msra.mxu0 0.0
    %846 = vmatprep.subr.mxu0 0.0
    %847 = vmatpush1.msra.mxu0 0.0
    %848 = vmatprep.subr.mxu0 0.0
    %849 = vmatpush1.msra.mxu0 0.0
    %850 = vmatprep.subr.mxu0 0.0
    %851 = vmatpush1.msra.mxu0 0.0
    %852 = vmatprep.subr.mxu0 0.0
    %853 = vmatpush1.msra.mxu0 0.0
    %854 = vmatprep.mubr.f32.mxu0 0.0
    %855 = vmatmul.mubr.f32.gmra.mrb[0].mxu0 %v751
    %v856 = vpop.f32.mrb[0].mxu0
    %v857 = vadd.f32 %v788, %v856
    %v858 = vpop.f32.mrb[0].mxu0
    %859 = vmatprep.mubr.f32.mxu0 0.0
    %860 = vmatmul.mubr.f32.gmra.mrb[0].mxu0 %v752
    %v861 = vpop.f32.mrb[0].mxu0
    %v862 = vadd.f32 %v788, %v861
    %v863 = vpop.f32.mrb[0].mxu0
    %864 = vmatprep.mubr.f32.mxu0 0.0
    %865 = vmatmul.mubr.f32.gmra.mrb[0].mxu0 %v753
    %v866 = vpop.f32.mrb[0].mxu0
    %v867 = vadd.f32 %v788, %v866
    %v868 = vpop.f32.mrb[0].mxu0
    %869 = vmatprep.mubr.f32.mxu0 0.0
    %870 = vmatmul.mubr.f32.gmra.mrb[0].mxu0 %v754
    %v871 = vpop.f32.mrb[0].mxu0
    %v872 = vadd.f32 %v788, %v871
    %v873 = vpop.f32.mrb[0].mxu0
    %874 = vmatprep.mubr.f32.mxu0 0.0
    %875 = vmatmul.mubr.f32.gmra.mrb[0].mxu0 %v755
    %v876 = vpop.f32.mrb[0].mxu0
    %v877 = vadd.f32 %v788, %v876
    %v878 = vpop.f32.mrb[0].mxu0
    %879 = vmatprep.mubr.f32.mxu0 0.0
    %880 = vmatmul.mubr.f32.gmra.mrb[0].mxu0 %v756
    %v881 = vpop.f32.mrb[0].mxu0
    %v882 = vadd.f32 %v788, %v881
    %v883 = vpop.f32.mrb[0].mxu0
    %884 = vmatprep.mubr.f32.mxu0 0.0
    %885 = vmatmul.mubr.f32.gmra.mrb[0].mxu0 %v757
    %v886 = vpop.f32.mrb[0].mxu0
    %v887 = vadd.f32 %v788, %v886
    %v888 = vpop.f32.mrb[0].mxu0
    %889 = vmatprep.mubr.f32.mxu0 0.0
    %890 = vmatmul.mubr.f32.gmra.mrb[0].mxu0 %v758
    %v891 = vpop.f32.mrb[0].mxu0
    %v892 = vadd.f32 %v788, %v891
    %v893 = vpop.f32.mrb[0].mxu0
    %894 = vmatprep.mubr.f32.mxu0 0.0
    %895 = vmatmul.mubr.f32.gmra.mrb[0].mxu0 %v759
    %v896 = vpop.f32.mrb[0].mxu0
    %v897 = vadd.f32 %v788, %v896
    %v898 = vpop.f32.mrb[0].mxu0
    %899 = vmatprep.mubr.f32.mxu0 0.0
    %900 = vmatmul.mubr.f32.gmra.mrb[0].mxu0 %v760
    %v901 = vpop.f32.mrb[0].mxu0
    %v902 = vadd.f32 %v788, %v901
    %v903 = vpop.f32.mrb[0].mxu0
    %904 = vmatprep.mubr.f32.mxu0 0.0
    %905 = vmatmul.mubr.f32.gmra.mrb[0].mxu0 %v761
    %v906 = vpop.f32.mrb[0].mxu0
    %v907 = vadd.f32 %v788, %v906
    %v908 = vpop.f32.mrb[0].mxu0
    %909 = vmatprep.mubr.f32.mxu0 0.0
    %910 = vmatmul.mubr.f32.gmra.mrb[0].mxu0 %v762
    %v911 = vpop.f32.mrb[0].mxu0
    %v912 = vadd.f32 %v788, %v911
    %v913 = vpop.f32.mrb[0].mxu0
    %914 = vmatprep.mubr.f32.mxu0 0.0
    %915 = vmatmul.mubr.f32.gmra.mrb[0].mxu0 %v763
    %v916 = vpop.f32.mrb[0].mxu0
    %v917 = vadd.f32 %v788, %v916
    %v918 = vpop.f32.mrb[0].mxu0
    %919 = vmatprep.mubr.f32.mxu0 0.0
    %920 = vmatmul.mubr.f32.gmra.mrb[0].mxu0 %v764
    %v921 = vpop.f32.mrb[0].mxu0
    %v922 = vadd.f32 %v788, %v921
    %v923 = vpop.f32.mrb[0].mxu0
    %924 = vmatprep.mubr.f32.mxu0 0.0
    %925 = vmatmul.mubr.f32.gmra.mrb[0].mxu0 %v765
    %v926 = vpop.f32.mrb[0].mxu0
    %v927 = vadd.f32 %v788, %v926
    %v928 = vpop.f32.mrb[0].mxu0
    %929 = vmatprep.mubr.f32.mxu0 0.0
    %930 = vmatmul.mubr.f32.gmra.mrb[0].mxu0 %v766
    %v931 = vpop.f32.mrb[0].mxu0
    %v932 = vadd.f32 %v788, %v931
    %v933 = vpop.f32.mrb[0].mxu0
    %934 = vdwg.mxu0
    %935 = vst [vmem:[#allocation8] sm:$0xff] %v857
    %936 = vst [vmem:[#allocation8 + $0x8] sm:$0xff] %v862
    %937 = vst [vmem:[#allocation8 + $0x10] sm:$0xff] %v867
    %938 = vst [vmem:[#allocation8 + $0x18] sm:$0xff] %v872
    %939 = vst [vmem:[#allocation8 + $0x20] sm:$0xff] %v877
    %940 = vst [vmem:[#allocation8 + $0x28] sm:$0xff] %v882
    %941 = vst [vmem:[#allocation8 + $0x30] sm:$0xff] %v887
    %942 = vst [vmem:[#allocation8 + $0x38] sm:$0xff] %v892
    %943 = vst [vmem:[#allocation8 + $0x40] sm:$0xff] %v897
    %944 = vst [vmem:[#allocation8 + $0x48] sm:$0xff] %v902
    %945 = vst [vmem:[#allocation8 + $0x50] sm:$0xff] %v907
    %946 = vst [vmem:[#allocation8 + $0x58] sm:$0xff] %v912
    %947 = vst [vmem:[#allocation8 + $0x60] sm:$0xff] %v917
    %948 = vst [vmem:[#allocation8 + $0x68] sm:$0xff] %v922
    %949 = vst [vmem:[#allocation8 + $0x70] sm:$0xff] %v927
    %950 = vst [vmem:[#allocation8 + $0x78] sm:$0xff] %v932
    // Predicated region
    $region42: #{tpu_custom_call.1} parent=1 // pred_check
      _
    $region43: #{tpu_custom_call.1} parent=1 // pred_check_branch
      %952 = sbr.rel (0) target = $region45
    $region44: #{tpu_custom_call.1} parent=1 // pred_region
      %s954 = ssub.s32 2048, 2048
      %955 = vsyncadd [#allocation4], %s954
      %s956 = sshll.u32 [#allocation8], 4
      %s957 = int_to_ptr.vmem [resolvable:$true] %s956
      %962 = dma.vmem_to_hbm [thread:$0]  %s957, 2048, %s7, [#allocation4], 128, 128, 8
    $region45: #{tpu_custom_call.1} parent=1 // pred_fallthru
      _
    // Predicated region
    $region46: #{tpu_custom_call.1} parent=1 // pred_check
      _
    $region47: #{tpu_custom_call.1} parent=1 // pred_check_branch
      %964 = sbr.rel (0) target = $region49
    $region48: #{tpu_custom_call.1} parent=1 // pred_region
      %965 = dma.done [#allocation4], 2048
    $region49: #{tpu_custom_call.1} parent=1 // pred_fallthru
      _
    %966 = vsyncpa [#allocation3], 1
    %967 = vsyncpa [#allocation6], 1
    %968 = vsyncpa [#allocation4], 1

// kernel: tpu_custom_call.1
$region0: #{tpu_custom_call.1}
  #allocation0 [shape = 'u32[]', space=smem, size = 0x4, offset = 0x4, fixed_abs, tag = 'smem constant byte address 0x4 - core index']
  #allocation1 [shape = 'u32[144,128]{1,0:T(1,128)}', space=vmem, size = 0x12000, scoped, tag = 'internal scratch']
  %s0 = inlined_call_operand.hbm [shape: f32[128,128], index: 0, kind: input, shape index: {}]
  %s1 = inlined_call_operand.hbm [shape: f32[128,256], index: 1, kind: input, shape index: {}]
  %s2 = inlined_call_operand.vmem [shape: f32[1,256], index: 2, kind: input, shape index: {}]
  %s3 = inlined_call_operand.vmem [shape: f32[1,128], index: 3, kind: input, shape index: {}]
  %s4 = inlined_call_operand.vmem [shape: f32[1,128], index: 4, kind: input, shape index: {}]
  %s5 = inlined_call_operand.hbm [shape: f32[128,128], index: 5, kind: input, shape index: {}]
  %s6 = inlined_call_operand.vmem [shape: f32[1,128], index: 6, kind: input, shape index: {}]
  %s7 = inlined_call_operand.hbm [shape: f32[128,128], index: 7, kind: output, shape index: {}]
  %s8 = sld [smem:[#allocation0]]
  $region50: #{tpu_custom_call.1} parent=0
    _
  %s10 = ssub.s32 1, %s8
  %s11 = scalar_select 0, %s10, %s8
  $region1: #{tpu_custom_call.1} parent=0
    #allocation2 [shape = 'u8[65536]{0}', space=vmem, size = 0x10000, scoped, tag = 'input window, operand 0, single buffered']
    #allocation3 [shape = 's32[1]{0}', space=sflag, size = 0x4, scoped, tag = 'scoped memory for tpu_custom_call.1']
    #allocation4 [shape = 's32[1]{0}', space=sflag, size = 0x4, scoped, tag = 'scoped memory for tpu_custom_call.1']
    #allocation5 [shape = 'u8[131072]{0}', space=vmem, size = 0x20000, scoped, tag = 'input window, operand 1, single buffered']
    #allocation6 [shape = 's32[1]{0}', space=sflag, size = 0x4, scoped, tag = 'scoped memory for tpu_custom_call.1']
    #allocation7 [shape = 'u8[65536]{0}', space=vmem, size = 0x10000, scoped, tag = 'input window, operand 5, single buffered']
    #allocation8 [shape = 'u8[65536]{0}', space=vmem, size = 0x10000, scoped, tag = 'output window, operand 0, single buffered']
    %12 = vsyncpa [#allocation3], 0
    %13 = vsyncpa [#allocation6], 0
    %14 = vsyncpa [#allocation4], 0
    // Predicated region
    $region2: #{tpu_custom_call.1} parent=1 // pred_check
      _
    $region3: #{tpu_custom_call.1} parent=1 // pred_check_branch
      %16 = sbr.rel (0) target = $region5
    $region4: #{tpu_custom_call.1} parent=1 // pred_region
      %s18 = ssub.s32 2048, 2048
      %19 = vsyncadd [#allocation3], %s18
      %s20 = sshll.u32 [#allocation2], 4
      %s21 = int_to_ptr.vmem [resolvable:$true] %s20
      %26 = dma.hbm_to_vmem [thread:$0]  %s0, 2048, %s21, [#allocation3], 128, 128, 8
    $region5: #{tpu_custom_call.1} parent=1 // pred_fallthru
      _
    // Predicated region
    $region6: #{tpu_custom_call.1} parent=1 // pred_check
      _
    $region7: #{tpu_custom_call.1} parent=1 // pred_check_branch
      %28 = sbr.rel (0) target = $region9
    $region8: #{tpu_custom_call.1} parent=1 // pred_region
      %s30 = ssub.s32 4096, 4096
      %31 = vsyncadd [#allocation6], %s30
      %s32 = sshll.u32 [#allocation5], 4
      %s33 = int_to_ptr.vmem [resolvable:$true] %s32
      %38 = dma.hbm_to_vmem [thread:$0]  %s1, 4096, %s33, [#allocation6], 256, 256, 16
    $region9: #{tpu_custom_call.1} parent=1 // pred_fallthru
      _
    // Predicated region
    $region10: #{tpu_custom_call.1} parent=1 // pred_check
      _
    $region11: #{tpu_custom_call.1} parent=1 // pred_check_branch
      %40 = sbr.rel (0) target = $region13
    $region12: #{tpu_custom_call.1} parent=1 // pred_region
      _
    $region13: #{tpu_custom_call.1} parent=1 // pred_fallthru
      _
    // Predicated region
    $region14: #{tpu_custom_call.1} parent=1 // pred_check
      _
    $region15: #{tpu_custom_call.1} parent=1 // pred_check_branch
      %42 = sbr.rel (0) target = $region17
    $region16: #{tpu_custom_call.1} parent=1 // pred_region
      _
    $region17: #{tpu_custom_call.1} parent=1 // pred_fallthru
      _
    // Predicated region
    $region18: #{tpu_custom_call.1} parent=1 // pred_check
      _
    $region19: #{tpu_custom_call.1} parent=1 // pred_check_branch
      %44 = sbr.rel (0) target = $region21
    $region20: #{tpu_custom_call.1} parent=1 // pred_region
      _
    $region21: #{tpu_custom_call.1} parent=1 // pred_fallthru
      _
    // Predicated region
    $region22: #{tpu_custom_call.1} parent=1 // pred_check
      _
    $region23: #{tpu_custom_call.1} parent=1 // pred_check_branch
      %46 = sbr.rel (0) target = $region25
    $region24: #{tpu_custom_call.1} parent=1 // pred_region
      %s48 = ssub.s32 2048, 2048
      %49 = vsyncadd [#allocation6], %s48
      %s50 = sshll.u32 [#allocation7], 4
      %s51 = int_to_ptr.vmem [resolvable:$true] %s50
      %56 = dma.hbm_to_vmem [thread:$0]  %s5, 2048, %s51, [#allocation6], 128, 128, 8
    $region25: #{tpu_custom_call.1} parent=1 // pred_fallthru
      _
    // Predicated region
    $region26: #{tpu_custom_call.1} parent=1 // pred_check
      _
    $region27: #{tpu_custom_call.1} parent=1 // pred_check_branch
      %58 = sbr.rel (0) target = $region29
    $region28: #{tpu_custom_call.1} parent=1 // pred_region
      _
    $region29: #{tpu_custom_call.1} parent=1 // pred_fallthru
      _
    // Predicated region
    $region30: #{tpu_custom_call.1} parent=1 // pred_check
      _
    $region31: #{tpu_custom_call.1} parent=1 // pred_check_branch
      %60 = sbr.rel (0) target = $region33
    $region32: #{tpu_custom_call.1} parent=1 // pred_region
      %61 = dma.done [#allocation3], 2048
    $region33: #{tpu_custom_call.1} parent=1 // pred_fallthru
      _
    // Predicated region
    $region34: #{tpu_custom_call.1} parent=1 // pred_check
      _
    $region35: #{tpu_custom_call.1} parent=1 // pred_check_branch
      %63 = sbr.rel (0) target = $region37
    $region36: #{tpu_custom_call.1} parent=1 // pred_region
      %64 = dma.done [#allocation6], 4096
    $region37: #{tpu_custom_call.1} parent=1 // pred_fallthru
      _
    // Predicated region
    $region38: #{tpu_custom_call.1} parent=1 // pred_check
      _
    $region39: #{tpu_custom_call.1} parent=1 // pred_check_branch
      %66 = sbr.rel (0) target = $region41
    $region40: #{tpu_custom_call.1} parent=1 // pred_region
      %67 = dma.done [#allocation6], 2048
    $region41: #{tpu_custom_call.1} parent=1 // pred_fallthru
      _
    %v68 = vld [vmem:[#allocation2] sm:$0xff]
    %v69 = vld [vmem:[#allocation2 + $0x8] sm:$0xff]
    %v70 = vld [vmem:[#allocation2 + $0x10] sm:$0xff]
    %v71 = vld [vmem:[#allocation2 + $0x18] sm:$0xff]
    %v72 = vld [vmem:[#allocation2 + $0x20] sm:$0xff]
    %v73 = vld [vmem:[#allocation2 + $0x28] sm:$0xff]
    %v74 = vld [vmem:[#allocation2 + $0x30] sm:$0xff]
    %v75 = vld [vmem:[#allocation2 + $0x38] sm:$0xff]
    %v76 = vld [vmem:[#allocation2 + $0x40] sm:$0xff]
    %v77 = vld [vmem:[#allocation2 + $0x48] sm:$0xff]
    %v78 = vld [vmem:[#allocation2 + $0x50] sm:$0xff]
    %v79 = vld [vmem:[#allocation2 + $0x58] sm:$0xff]
    %v80 = vld [vmem:[#allocation2 + $0x60] sm:$0xff]
    %v81 = vld [vmem:[#allocation2 + $0x68] sm:$0xff]
    %v82 = vld [vmem:[#allocation2 + $0x70] sm:$0xff]
    %v83 = vld [vmem:[#allocation2 + $0x78] sm:$0xff]
    %v84 = vld [vmem:[#allocation5] sm:$0xff]
    %v85 = vld [vmem:[#allocation5 + $0x8] sm:$0xff]
    %v86 = vld [vmem:[#allocation5 + $0x10] sm:$0xff]
    %v87 = vld [vmem:[#allocation5 + $0x18] sm:$0xff]
    %v88 = vld [vmem:[#allocation5 + $0x20] sm:$0xff]
    %v89 = vld [vmem:[#allocation5 + $0x28] sm:$0xff]
    %v90 = vld [vmem:[#allocation5 + $0x30] sm:$0xff]
    %v91 = vld [vmem:[#allocation5 + $0x38] sm:$0xff]
    %v92 = vld [vmem:[#allocation5 + $0x40] sm:$0xff]
    %v93 = vld [vmem:[#allocation5 + $0x48] sm:$0xff]
    %v94 = vld [vmem:[#allocation5 + $0x50] sm:$0xff]
    %v95 = vld [vmem:[#allocation5 + $0x58] sm:$0xff]
    %v96 = vld [vmem:[#allocation5 + $0x60] sm:$0xff]
    %v97 = vld [vmem:[#allocation5 + $0x68] sm:$0xff]
    %v98 = vld [vmem:[#allocation5 + $0x70] sm:$0xff]
    %v99 = vld [vmem:[#allocation5 + $0x78] sm:$0xff]
    %v100 = vld [vmem:[#allocation5 + $0x80] sm:$0xff]
    %v101 = vld [vmem:[#allocation5 + $0x88] sm:$0xff]
    %v102 = vld [vmem:[#allocation5 + $0x90] sm:$0xff]
    %v103 = vld [vmem:[#allocation5 + $0x98] sm:$0xff]
    %v104 = vld [vmem:[#allocation5 + $0xa0] sm:$0xff]
    %v105 = vld [vmem:[#allocation5 + $0xa8] sm:$0xff]
    %v106 = vld [vmem:[#allocation5 + $0xb0] sm:$0xff]
    %v107 = vld [vmem:[#allocation5 + $0xb8] sm:$0xff]
    %v108 = vld [vmem:[#allocation5 + $0xc0] sm:$0xff]
    %v109 = vld [vmem:[#allocation5 + $0xc8] sm:$0xff]
    %v110 = vld [vmem:[#allocation5 + $0xd0] sm:$0xff]
    %v111 = vld [vmem:[#allocation5 + $0xd8] sm:$0xff]
    %v112 = vld [vmem:[#allocation5 + $0xe0] sm:$0xff]
    %v113 = vld [vmem:[#allocation5 + $0xe8] sm:$0xff]
    %v114 = vld [vmem:[#allocation5 + $0xf0] sm:$0xff]
    %v115 = vld [vmem:[#allocation5 + $0xf8] sm:$0xff]
    %v116 = vld [vmem:[%s2] sm:$0x3]
    %v118 = vlaneseq
    %v119 = vshrl.u32 %v118, 7
    %v120 = vsub.s32 0, %v119
    %v121 = vrot.slane %v116, %v120
    %v122 = vlaneseq
    %v123 = vshrl.u32 %v122, 7
    %v124 = vsub.s32 1, %v123
    %v125 = vrot.slane %v116, %v124
    %128 = vmatprep.subr.mxu0 %v85
    %129 = vmatpush1.msra.mxu0 %v84
    %130 = vmatprep.subr.mxu0 %v87
    %131 = vmatpush1.msra.mxu0 %v86
    %132 = vmatprep.subr.mxu0 %v89
    %133 = vmatpush1.msra.mxu0 %v88
    %134 = vmatprep.subr.mxu0 %v91
    %135 = vmatpush1.msra.mxu0 %v90
    %136 = vmatprep.subr.mxu0 %v93
    %137 = vmatpush1.msra.mxu0 %v92
    %138 = vmatprep.subr.mxu0 %v95
    %139 = vmatpush1.msra.mxu0 %v94
    %140 = vmatprep.subr.mxu0 %v97
    %141 = vmatpush1.msra.mxu0 %v96
    %142 = vmatprep.subr.mxu0 %v99
    %143 = vmatpush1.msra.mxu0 %v98
    %144 = vmatprep.subr.mxu0 %v101
    %145 = vmatpush1.msra.mxu0 %v100
    %146 = vmatprep.subr.mxu0 %v103
    %147 = vmatpush1.msra.mxu0 %v102
    %148 = vmatprep.subr.mxu0 %v105
    %149 = vmatpush1.msra.mxu0 %v104
    %150 = vmatprep.subr.mxu0 %v107
    %151 = vmatpush1.msra.mxu0 %v106
    %152 = vmatprep.subr.mxu0 %v109
    %153 = vmatpush1.msra.mxu0 %v108
    %154 = vmatprep.subr.mxu0 %v111
    %155 = vmatpush1.msra.mxu0 %v110
    %156 = vmatprep.subr.mxu0 %v113
    %157 = vmatpush1.msra.mxu0 %v112
    %158 = vmatprep.subr.mxu0 %v115
    %159 = vmatpush1.msra.mxu0 %v114
    %160 = vmatprep.subr.mxu0 0.0
    %161 = vmatpush1.msra.mxu0 0.0
    %162 = vmatprep.subr.mxu0 0.0
    %163 = vmatpush1.msra.mxu0 0.0
    %164 = vmatprep.subr.mxu0 0.0
    %165 = vmatpush1.msra.mxu0 0.0
    %166 = vmatprep.subr.mxu0 0.0
    %167 = vmatpush1.msra.mxu0 0.0
    %168 = vmatprep.subr.mxu0 0.0
    %169 = vmatpush1.msra.mxu0 0.0
    %170 = vmatprep.subr.mxu0 0.0
    %171 = vmatpush1.msra.mxu0 0.0
    %172 = vmatprep.subr.mxu0 0.0
    %173 = vmatpush1.msra.mxu0 0.0
    %174 = vmatprep.subr.mxu0 0.0
    %175 = vmatpush1.msra.mxu0 0.0
    %176 = vmatprep.subr.mxu0 0.0
    %177 = vmatpush1.msra.mxu0 0.0
    %178 = vmatprep.subr.mxu0 0.0
    %179 = vmatpush1.msra.mxu0 0.0
    %180 = vmatprep.subr.mxu0 0.0
    %181 = vmatpush1.msra.mxu0 0.0
    %182 = vmatprep.subr.mxu0 0.0
    %183 = vmatpush1.msra.mxu0 0.0
    %184 = vmatprep.subr.mxu0 0.0
    %185 = vmatpush1.msra.mxu0 0.0
    %186 = vmatprep.subr.mxu0 0.0
    %187 = vmatpush1.msra.mxu0 0.0
    %188 = vmatprep.subr.mxu0 0.0
    %189 = vmatpush1.msra.mxu0 0.0
    %190 = vmatprep.subr.mxu0 0.0
    %191 = vmatpush1.msra.mxu0 0.0
    %192 = vmatprep.mubr.f32.mxu0 0.0
    %193 = vmatmul.mubr.f32.gmra.mrb[0].mxu0 %v68
    %v194 = vpop.f32.mrb[0].mxu0
    %v195 = vadd.f32 %v121, %v194
    %v196 = vpop.f32.mrb[0].mxu0
    %v197 = vadd.f32 %v125, %v196
    %198 = vmatprep.mubr.f32.mxu0 0.0
    %199 = vmatmul.mubr.f32.gmra.mrb[0].mxu0 %v69
    %v200 = vpop.f32.mrb[0].mxu0
    %v201 = vadd.f32 %v121, %v200
    %v202 = vpop.f32.mrb[0].mxu0
    %v203 = vadd.f32 %v125, %v202
    %204 = vmatprep.mubr.f32.mxu0 0.0
    %205 = vmatmul.mubr.f32.gmra.mrb[0].mxu0 %v70
    %v206 = vpop.f32.mrb[0].mxu0
    %v207 = vadd.f32 %v121, %v206
    %v208 = vpop.f32.mrb[0].mxu0
    %v209 = vadd.f32 %v125, %v208
    %210 = vmatprep.mubr.f32.mxu0 0.0
    %211 = vmatmul.mubr.f32.gmra.mrb[0].mxu0 %v71
    %v212 = vpop.f32.mrb[0].mxu0
    %v213 = vadd.f32 %v121, %v212
    %v214 = vpop.f32.mrb[0].mxu0
    %v215 = vadd.f32 %v125, %v214
    %216 = vmatprep.mubr.f32.mxu0 0.0
    %217 = vmatmul.mubr.f32.gmra.mrb[0].mxu0 %v72
    %v218 = vpop.f32.mrb[0].mxu0
    %v219 = vadd.f32 %v121, %v218
    %v220 = vpop.f32.mrb[0].mxu0
    %v221 = vadd.f32 %v125, %v220
    %222 = vmatprep.mubr.f32.mxu0 0.0
    %223 = vmatmul.mubr.f32.gmra.mrb[0].mxu0 %v73
    %v224 = vpop.f32.mrb[0].mxu0
    %v225 = vadd.f32 %v121, %v224
    %v226 = vpop.f32.mrb[0].mxu0
    %v227 = vadd.f32 %v125, %v226
    %228 = vmatprep.mubr.f32.mxu0 0.0
    %229 = vmatmul.mubr.f32.gmra.mrb[0].mxu0 %v74
    %v230 = vpop.f32.mrb[0].mxu0
    %v231 = vadd.f32 %v121, %v230
    %v232 = vpop.f32.mrb[0].mxu0
    %v233 = vadd.f32 %v125, %v232
    %234 = vmatprep.mubr.f32.mxu0 0.0
    %235 = vmatmul.mubr.f32.gmra.mrb[0].mxu0 %v75
    %v236 = vpop.f32.mrb[0].mxu0
    %v237 = vadd.f32 %v121, %v236
    %v238 = vpop.f32.mrb[0].mxu0
    %v239 = vadd.f32 %v125, %v238
    %240 = vmatprep.mubr.f32.mxu0 0.0
    %241 = vmatmul.mubr.f32.gmra.mrb[0].mxu0 %v76
    %v242 = vpop.f32.mrb[0].mxu0
    %v243 = vadd.f32 %v121, %v242
    %v244 = vpop.f32.mrb[0].mxu0
    %v245 = vadd.f32 %v125, %v244
    %246 = vmatprep.mubr.f32.mxu0 0.0
    %247 = vmatmul.mubr.f32.gmra.mrb[0].mxu0 %v77
    %v248 = vpop.f32.mrb[0].mxu0
    %v249 = vadd.f32 %v121, %v248
    %v250 = vpop.f32.mrb[0].mxu0
    %v251 = vadd.f32 %v125, %v250
    %252 = vmatprep.mubr.f32.mxu0 0.0
    %253 = vmatmul.mubr.f32.gmra.mrb[0].mxu0 %v78
    %v254 = vpop.f32.mrb[0].mxu0
    %v255 = vadd.f32 %v121, %v254
    %v256 = vpop.f32.mrb[0].mxu0
    %v257 = vadd.f32 %v125, %v256
    %258 = vmatprep.mubr.f32.mxu0 0.0
    %259 = vmatmul.mubr.f32.gmra.mrb[0].mxu0 %v79
    %v260 = vpop.f32.mrb[0].mxu0
    %v261 = vadd.f32 %v121, %v260
    %v262 = vpop.f32.mrb[0].mxu0
    %v263 = vadd.f32 %v125, %v262
    %264 = vmatprep.mubr.f32.mxu0 0.0
    %265 = vmatmul.mubr.f32.gmra.mrb[0].mxu0 %v80
    %v266 = vpop.f32.mrb[0].mxu0
    %v267 = vadd.f32 %v121, %v266
    %v268 = vpop.f32.mrb[0].mxu0
    %v269 = vadd.f32 %v125, %v268
    %270 = vmatprep.mubr.f32.mxu0 0.0
    %271 = vmatmul.mubr.f32.gmra.mrb[0].mxu0 %v81
    %v272 = vpop.f32.mrb[0].mxu0
    %v273 = vadd.f32 %v121, %v272
    %v274 = vpop.f32.mrb[0].mxu0
    %v275 = vadd.f32 %v125, %v274
    %276 = vmatprep.mubr.f32.mxu0 0.0
    %277 = vmatmul.mubr.f32.gmra.mrb[0].mxu0 %v82
    %v278 = vpop.f32.mrb[0].mxu0
    %v279 = vadd.f32 %v121, %v278
    %v280 = vpop.f32.mrb[0].mxu0
    %v281 = vadd.f32 %v125, %v280
    %282 = vmatprep.mubr.f32.mxu0 0.0
    %283 = vmatmul.mubr.f32.gmra.mrb[0].mxu0 %v83
    %v284 = vpop.f32.mrb[0].mxu0
    %v285 = vadd.f32 %v121, %v284
    %v286 = vpop.f32.mrb[0].mxu0
    %v287 = vadd.f32 %v125, %v286
    %288 = vdwg.mxu0
    %v289 = vmul.f32 %v197, 0.5
    %v290 = vmul.f32 %v203, 0.5
    %v291 = vmul.f32 %v209, 0.5
    %v292 = vmul.f32 %v215, 0.5
    %v293 = vmul.f32 %v221, 0.5
    %v294 = vmul.f32 %v227, 0.5
    %v295 = vmul.f32 %v233, 0.5
    %v296 = vmul.f32 %v239, 0.5
    %v297 = vmul.f32 %v245, 0.5
    %v298 = vmul.f32 %v251, 0.5
    %v299 = vmul.f32 %v257, 0.5
    %v300 = vmul.f32 %v263, 0.5
    %v301 = vmul.f32 %v269, 0.5
    %v302 = vmul.f32 %v275, 0.5
    %v303 = vmul.f32 %v281, 0.5
    %v304 = vmul.f32 %v287, 0.5
    %v305 = vmul.f32 %v197, 0.70710677
    %v306 = vmul.f32 %v203, 0.70710677
    %v307 = vmul.f32 %v209, 0.70710677
    %v308 = vmul.f32 %v215, 0.70710677
    %v309 = vmul.f32 %v221, 0.70710677
    %v310 = vmul.f32 %v227, 0.70710677
    %v311 = vmul.f32 %v233, 0.70710677
    %v312 = vmul.f32 %v239, 0.70710677
    %v313 = vmul.f32 %v245, 0.70710677
    %v314 = vmul.f32 %v251, 0.70710677
    %v315 = vmul.f32 %v257, 0.70710677
    %v316 = vmul.f32 %v263, 0.70710677
    %v317 = vmul.f32 %v269, 0.70710677
    %v318 = vmul.f32 %v275, 0.70710677
    %v319 = vmul.f32 %v281, 0.70710677
    %v320 = vmul.f32 %v287, 0.70710677
    %v321 = verf.f32.pop %v305
    %v322 = verf.f32.pop %v306
    %v323 = verf.f32.pop %v307
    %v324 = verf.f32.pop %v308
    %v325 = verf.f32.pop %v309
    %v326 = verf.f32.pop %v310
    %v327 = verf.f32.pop %v311
    %v328 = verf.f32.pop %v312
    %v329 = verf.f32.pop %v313
    %v330 = verf.f32.pop %v314
    %v331 = verf.f32.pop %v315
    %v332 = verf.f32.pop %v316
    %v333 = verf.f32.pop %v317
    %v334 = verf.f32.pop %v318
    %v335 = verf.f32.pop %v319
    %v336 = verf.f32.pop %v320
    %v337 = vadd.f32 %v321, 1.0
    %v338 = vadd.f32 %v322, 1.0
    %v339 = vadd.f32 %v323, 1.0
    %v340 = vadd.f32 %v324, 1.0
    %v341 = vadd.f32 %v325, 1.0
    %v342 = vadd.f32 %v326, 1.0
    %v343 = vadd.f32 %v327, 1.0
    %v344 = vadd.f32 %v328, 1.0
    %v345 = vadd.f32 %v329, 1.0
    %v346 = vadd.f32 %v330, 1.0
    %v347 = vadd.f32 %v331, 1.0
    %v348 = vadd.f32 %v332, 1.0
    %v349 = vadd.f32 %v333, 1.0
    %v350 = vadd.f32 %v334, 1.0
    %v351 = vadd.f32 %v335, 1.0
    %v352 = vadd.f32 %v336, 1.0
    %v353 = vmul.f32 %v289, %v337
    %v354 = vmul.f32 %v290, %v338
    %v355 = vmul.f32 %v291, %v339
    %v356 = vmul.f32 %v292, %v340
    %v357 = vmul.f32 %v293, %v341
    %v358 = vmul.f32 %v294, %v342
    %v359 = vmul.f32 %v295, %v343
    %v360 = vmul.f32 %v296, %v344
    %v361 = vmul.f32 %v297, %v345
    %v362 = vmul.f32 %v298, %v346
    %v363 = vmul.f32 %v299, %v347
    %v364 = vmul.f32 %v300, %v348
    %v365 = vmul.f32 %v301, %v349
    %v366 = vmul.f32 %v302, %v350
    %v367 = vmul.f32 %v303, %v351
    %v368 = vmul.f32 %v304, %v352
    %v369 = vmul.f32 %v195, %v353
    %v370 = vmul.f32 %v201, %v354
    %v371 = vmul.f32 %v207, %v355
    %v372 = vmul.f32 %v213, %v356
    %v373 = vmul.f32 %v219, %v357
    %v374 = vmul.f32 %v225, %v358
    %v375 = vmul.f32 %v231, %v359
    %v376 = vmul.f32 %v237, %v360
    %v377 = vmul.f32 %v243, %v361
    %v378 = vmul.f32 %v249, %v362
    %v379 = vmul.f32 %v255, %v363
    %v380 = vmul.f32 %v261, %v364
    %v381 = vmul.f32 %v267, %v365
    %v382 = vmul.f32 %v273, %v366
    %v383 = vmul.f32 %v279, %v367
    %v384 = vmul.f32 %v285, %v368
    %v385 = vmul.f32 %v195, 0.5
    %v386 = vmul.f32 %v201, 0.5
    %v387 = vmul.f32 %v207, 0.5
    %v388 = vmul.f32 %v213, 0.5
    %v389 = vmul.f32 %v219, 0.5
    %v390 = vmul.f32 %v225, 0.5
    %v391 = vmul.f32 %v231, 0.5
    %v392 = vmul.f32 %v237, 0.5
    %v393 = vmul.f32 %v243, 0.5
    %v394 = vmul.f32 %v249, 0.5
    %v395 = vmul.f32 %v255, 0.5
    %v396 = vmul.f32 %v261, 0.5
    %v397 = vmul.f32 %v267, 0.5
    %v398 = vmul.f32 %v273, 0.5
    %v399 = vmul.f32 %v279, 0.5
    %v400 = vmul.f32 %v285, 0.5
    %v401 = vmul.f32 %v195, 0.70710677
    %v402 = vmul.f32 %v201, 0.70710677
    %v403 = vmul.f32 %v207, 0.70710677
    %v404 = vmul.f32 %v213, 0.70710677
    %v405 = vmul.f32 %v219, 0.70710677
    %v406 = vmul.f32 %v225, 0.70710677
    %v407 = vmul.f32 %v231, 0.70710677
    %v408 = vmul.f32 %v237, 0.70710677
    %v409 = vmul.f32 %v243, 0.70710677
    %v410 = vmul.f32 %v249, 0.70710677
    %v411 = vmul.f32 %v255, 0.70710677
    %v412 = vmul.f32 %v261, 0.70710677
    %v413 = vmul.f32 %v267, 0.70710677
    %v414 = vmul.f32 %v273, 0.70710677
    %v415 = vmul.f32 %v279, 0.70710677
    %v416 = vmul.f32 %v285, 0.70710677
    %v417 = verf.f32.pop %v401
    %v418 = verf.f32.pop %v402
    %v419 = verf.f32.pop %v403
    %v420 = verf.f32.pop %v404
    %v421 = verf.f32.pop %v405
    %v422 = verf.f32.pop %v406
    %v423 = verf.f32.pop %v407
    %v424 = verf.f32.pop %v408
    %v425 = verf.f32.pop %v409
    %v426 = verf.f32.pop %v410
    %v427 = verf.f32.pop %v411
    %v428 = verf.f32.pop %v412
    %v429 = verf.f32.pop %v413
    %v430 = verf.f32.pop %v414
    %v431 = verf.f32.pop %v415
    %v432 = verf.f32.pop %v416
    %v433 = vadd.f32 %v417, 1.0
    %v434 = vadd.f32 %v418, 1.0
    %v435 = vadd.f32 %v419, 1.0
    %v436 = vadd.f32 %v420, 1.0
    %v437 = vadd.f32 %v421, 1.0
    %v438 = vadd.f32 %v422, 1.0
    %v439 = vadd.f32 %v423, 1.0
    %v440 = vadd.f32 %v424, 1.0
    %v441 = vadd.f32 %v425, 1.0
    %v442 = vadd.f32 %v426, 1.0
    %v443 = vadd.f32 %v427, 1.0
    %v444 = vadd.f32 %v428, 1.0
    %v445 = vadd.f32 %v429, 1.0
    %v446 = vadd.f32 %v430, 1.0
    %v447 = vadd.f32 %v431, 1.0
    %v448 = vadd.f32 %v432, 1.0
    %v449 = vmul.f32 %v385, %v433
    %v450 = vmul.f32 %v386, %v434
    %v451 = vmul.f32 %v387, %v435
    %v452 = vmul.f32 %v388, %v436
    %v453 = vmul.f32 %v389, %v437
    %v454 = vmul.f32 %v390, %v438
    %v455 = vmul.f32 %v391, %v439
    %v456 = vmul.f32 %v392, %v440
    %v457 = vmul.f32 %v393, %v441
    %v458 = vmul.f32 %v394, %v442
    %v459 = vmul.f32 %v395, %v443
    %v460 = vmul.f32 %v396, %v444
    %v461 = vmul.f32 %v397, %v445
    %v462 = vmul.f32 %v398, %v446
    %v463 = vmul.f32 %v399, %v447
    %v464 = vmul.f32 %v400, %v448
    %v465 = vmul.f32 %v197, %v449
    %v466 = vmul.f32 %v203, %v450
    %v467 = vmul.f32 %v209, %v451
    %v468 = vmul.f32 %v215, %v452
    %v469 = vmul.f32 %v221, %v453
    %v470 = vmul.f32 %v227, %v454
    %v471 = vmul.f32 %v233, %v455
    %v472 = vmul.f32 %v239, %v456
    %v473 = vmul.f32 %v245, %v457
    %v474 = vmul.f32 %v251, %v458
    %v475 = vmul.f32 %v257, %v459
    %v476 = vmul.f32 %v263, %v460
    %v477 = vmul.f32 %v269, %v461
    %v478 = vmul.f32 %v275, %v462
    %v479 = vmul.f32 %v281, %v463
    %v480 = vmul.f32 %v287, %v464
    %v481 = vadd.f32 %v369, %v465
    %v482 = vadd.f32 %v370, %v466
    %v483 = vadd.f32 %v371, %v467
    %v484 = vadd.f32 %v372, %v468
    %v485 = vadd.f32 %v373, %v469
    %v486 = vadd.f32 %v374, %v470
    %v487 = vadd.f32 %v375, %v471
    %v488 = vadd.f32 %v376, %v472
    %v489 = vadd.f32 %v377, %v473
    %v490 = vadd.f32 %v378, %v474
    %v491 = vadd.f32 %v379, %v475
    %v492 = vadd.f32 %v380, %v476
    %v493 = vadd.f32 %v381, %v477
    %v494 = vadd.f32 %v382, %v478
    %v495 = vadd.f32 %v383, %v479
    %v496 = vadd.f32 %v384, %v480
    %497 = vadd.xlane.f32.xlu0 %v481
    %v498 = vpop.xlane.xlu0 %497
    %499 = vadd.xlane.f32.xlu0 %v482
    %v500 = vpop.xlane.xlu0 %499
    %501 = vadd.xlane.f32.xlu0 %v483
    %v502 = vpop.xlane.xlu0 %501
    %503 = vadd.xlane.f32.xlu0 %v484
    %v504 = vpop.xlane.xlu0 %503
    %505 = vadd.xlane.f32.xlu0 %v485
    %v506 = vpop.xlane.xlu0 %505
    %507 = vadd.xlane.f32.xlu0 %v486
    %v508 = vpop.xlane.xlu0 %507
    %509 = vadd.xlane.f32.xlu0 %v487
    %v510 = vpop.xlane.xlu0 %509
    %511 = vadd.xlane.f32.xlu0 %v488
    %v512 = vpop.xlane.xlu0 %511
    %513 = vadd.xlane.f32.xlu0 %v489
    %v514 = vpop.xlane.xlu0 %513
    %515 = vadd.xlane.f32.xlu0 %v490
    %v516 = vpop.xlane.xlu0 %515
    %517 = vadd.xlane.f32.xlu0 %v491
    %v518 = vpop.xlane.xlu0 %517
    %519 = vadd.xlane.f32.xlu0 %v492
    %v520 = vpop.xlane.xlu0 %519
    %521 = vadd.xlane.f32.xlu0 %v493
    %v522 = vpop.xlane.xlu0 %521
    %523 = vadd.xlane.f32.xlu0 %v494
    %v524 = vpop.xlane.xlu0 %523
    %525 = vadd.xlane.f32.xlu0 %v495
    %v526 = vpop.xlane.xlu0 %525
    %527 = vadd.xlane.f32.xlu0 %v496
    %v528 = vpop.xlane.xlu0 %527
    %v529 = vmul.f32 %v481, %v481
    %v530 = vmul.f32 %v482, %v482
    %v531 = vmul.f32 %v483, %v483
    %v532 = vmul.f32 %v484, %v484
    %v533 = vmul.f32 %v485, %v485
    %v534 = vmul.f32 %v486, %v486
    %v535 = vmul.f32 %v487, %v487
    %v536 = vmul.f32 %v488, %v488
    %v537 = vmul.f32 %v489, %v489
    %v538 = vmul.f32 %v490, %v490
    %v539 = vmul.f32 %v491, %v491
    %v540 = vmul.f32 %v492, %v492
    %v541 = vmul.f32 %v493, %v493
    %v542 = vmul.f32 %v494, %v494
    %v543 = vmul.f32 %v495, %v495
    %v544 = vmul.f32 %v496, %v496
    %545 = vadd.xlane.f32.xlu0 %v529
    %v546 = vpop.xlane.xlu0 %545
    %547 = vadd.xlane.f32.xlu0 %v530
    %v548 = vpop.xlane.xlu0 %547
    %549 = vadd.xlane.f32.xlu0 %v531
    %v550 = vpop.xlane.xlu0 %549
    %551 = vadd.xlane.f32.xlu0 %v532
    %v552 = vpop.xlane.xlu0 %551
    %553 = vadd.xlane.f32.xlu0 %v533
    %v554 = vpop.xlane.xlu0 %553
    %555 = vadd.xlane.f32.xlu0 %v534
    %v556 = vpop.xlane.xlu0 %555
    %557 = vadd.xlane.f32.xlu0 %v535
    %v558 = vpop.xlane.xlu0 %557
    %559 = vadd.xlane.f32.xlu0 %v536
    %v560 = vpop.xlane.xlu0 %559
    %561 = vadd.xlane.f32.xlu0 %v537
    %v562 = vpop.xlane.xlu0 %561
    %563 = vadd.xlane.f32.xlu0 %v538
    %v564 = vpop.xlane.xlu0 %563
    %565 = vadd.xlane.f32.xlu0 %v539
    %v566 = vpop.xlane.xlu0 %565
    %567 = vadd.xlane.f32.xlu0 %v540
    %v568 = vpop.xlane.xlu0 %567
    %569 = vadd.xlane.f32.xlu0 %v541
    %v570 = vpop.xlane.xlu0 %569
    %571 = vadd.xlane.f32.xlu0 %v542
    %v572 = vpop.xlane.xlu0 %571
    %573 = vadd.xlane.f32.xlu0 %v543
    %v574 = vpop.xlane.xlu0 %573
    %575 = vadd.xlane.f32.xlu0 %v544
    %v576 = vpop.xlane.xlu0 %575
    %v577 = vmul.f32 %v498, 0.015625
    %v578 = vmul.f32 %v500, 0.015625
    %v579 = vmul.f32 %v502, 0.015625
    %v580 = vmul.f32 %v504, 0.015625
    %v581 = vmul.f32 %v506, 0.015625
    %v582 = vmul.f32 %v508, 0.015625
    %v583 = vmul.f32 %v510, 0.015625
    %v584 = vmul.f32 %v512, 0.015625
    %v585 = vmul.f32 %v514, 0.015625
    %v586 = vmul.f32 %v516, 0.015625
    %v587 = vmul.f32 %v518, 0.015625
    %v588 = vmul.f32 %v520, 0.015625
    %v589 = vmul.f32 %v522, 0.015625
    %v590 = vmul.f32 %v524, 0.015625
    %v591 = vmul.f32 %v526, 0.015625
    %v592 = vmul.f32 %v528, 0.015625
    %v593 = vmul.f32 %v546, 0.015625
    %v594 = vmul.f32 %v548, 0.015625
    %v595 = vmul.f32 %v550, 0.015625
    %v596 = vmul.f32 %v552, 0.015625
    %v597 = vmul.f32 %v554, 0.015625
    %v598 = vmul.f32 %v556, 0.015625
    %v599 = vmul.f32 %v558, 0.015625
    %v600 = vmul.f32 %v560, 0.015625
    %v601 = vmul.f32 %v562, 0.015625
    %v602 = vmul.f32 %v564, 0.015625
    %v603 = vmul.f32 %v566, 0.015625
    %v604 = vmul.f32 %v568, 0.015625
    %v605 = vmul.f32 %v570, 0.015625
    %v606 = vmul.f32 %v572, 0.015625
    %v607 = vmul.f32 %v574, 0.015625
    %v608 = vmul.f32 %v576, 0.015625
    %v609 = vmul.f32 %v577, %v577
    %v610 = vmul.f32 %v578, %v578
    %v611 = vmul.f32 %v579, %v579
    %v612 = vmul.f32 %v580, %v580
    %v613 = vmul.f32 %v581, %v581
    %v614 = vmul.f32 %v582, %v582
    %v615 = vmul.f32 %v583, %v583
    %v616 = vmul.f32 %v584, %v584
    %v617 = vmul.f32 %v585, %v585
    %v618 = vmul.f32 %v586, %v586
    %v619 = vmul.f32 %v587, %v587
    %v620 = vmul.f32 %v588, %v588
    %v621 = vmul.f32 %v589, %v589
    %v622 = vmul.f32 %v590, %v590
    %v623 = vmul.f32 %v591, %v591
    %v624 = vmul.f32 %v592, %v592
    %v625 = vsub.f32 %v593, %v609
    %v626 = vsub.f32 %v594, %v610
    %v627 = vsub.f32 %v595, %v611
    %v628 = vsub.f32 %v596, %v612
    %v629 = vsub.f32 %v597, %v613
    %v630 = vsub.f32 %v598, %v614
    %v631 = vsub.f32 %v599, %v615
    %v632 = vsub.f32 %v600, %v616
    %v633 = vsub.f32 %v601, %v617
    %v634 = vsub.f32 %v602, %v618
    %v635 = vsub.f32 %v603, %v619
    %v636 = vsub.f32 %v604, %v620
    %v637 = vsub.f32 %v605, %v621
    %v638 = vsub.f32 %v606, %v622
    %v639 = vsub.f32 %v607, %v623
    %v640 = vsub.f32 %v608, %v624
    %v641 = vmax.f32 %v625, 0.0
    %v642 = vmax.f32 %v626, 0.0
    %v643 = vmax.f32 %v627, 0.0
    %v644 = vmax.f32 %v628, 0.0
    %v645 = vmax.f32 %v629, 0.0
    %v646 = vmax.f32 %v630, 0.0
    %v647 = vmax.f32 %v631, 0.0
    %v648 = vmax.f32 %v632, 0.0
    %v649 = vmax.f32 %v633, 0.0
    %v650 = vmax.f32 %v634, 0.0
    %v651 = vmax.f32 %v635, 0.0
    %v652 = vmax.f32 %v636, 0.0
    %v653 = vmax.f32 %v637, 0.0
    %v654 = vmax.f32 %v638, 0.0
    %v655 = vmax.f32 %v639, 0.0
    %v656 = vmax.f32 %v640, 0.0
    %v657 = vsub.f32 %v481, %v577
    %v658 = vsub.f32 %v482, %v578
    %v659 = vsub.f32 %v483, %v579
    %v660 = vsub.f32 %v484, %v580
    %v661 = vsub.f32 %v485, %v581
    %v662 = vsub.f32 %v486, %v582
    %v663 = vsub.f32 %v487, %v583
    %v664 = vsub.f32 %v488, %v584
    %v665 = vsub.f32 %v489, %v585
    %v666 = vsub.f32 %v490, %v586
    %v667 = vsub.f32 %v491, %v587
    %v668 = vsub.f32 %v492, %v588
    %v669 = vsub.f32 %v493, %v589
    %v670 = vsub.f32 %v494, %v590
    %v671 = vsub.f32 %v495, %v591
    %v672 = vsub.f32 %v496, %v592
    %v673 = vadd.f32 %v641, 1e-05
    %v674 = vadd.f32 %v642, 1e-05
    %v675 = vadd.f32 %v643, 1e-05
    %v676 = vadd.f32 %v644, 1e-05
    %v677 = vadd.f32 %v645, 1e-05
    %v678 = vadd.f32 %v646, 1e-05
    %v679 = vadd.f32 %v647, 1e-05
    %v680 = vadd.f32 %v648, 1e-05
    %v681 = vadd.f32 %v649, 1e-05
    %v682 = vadd.f32 %v650, 1e-05
    %v683 = vadd.f32 %v651, 1e-05
    %v684 = vadd.f32 %v652, 1e-05
    %v685 = vadd.f32 %v653, 1e-05
    %v686 = vadd.f32 %v654, 1e-05
    %v687 = vadd.f32 %v655, 1e-05
    %v688 = vadd.f32 %v656, 1e-05
    %v689 = vrsqrt.pop %v673
    %v690 = vrsqrt.pop %v674
    %v691 = vrsqrt.pop %v675
    %v692 = vrsqrt.pop %v676
    %v693 = vrsqrt.pop %v677
    %v694 = vrsqrt.pop %v678
    %v695 = vrsqrt.pop %v679
    %v696 = vrsqrt.pop %v680
    %v697 = vrsqrt.pop %v681
    %v698 = vrsqrt.pop %v682
    %v699 = vrsqrt.pop %v683
    %v700 = vrsqrt.pop %v684
    %v701 = vrsqrt.pop %v685
    %v702 = vrsqrt.pop %v686
    %v703 = vrsqrt.pop %v687
    %v704 = vrsqrt.pop %v688
    %v705 = vmul.f32 %v657, %v689
    %v706 = vmul.f32 %v658, %v690
    %v707 = vmul.f32 %v659, %v691
    %v708 = vmul.f32 %v660, %v692
    %v709 = vmul.f32 %v661, %v693
    %v710 = vmul.f32 %v662, %v694
    %v711 = vmul.f32 %v663, %v695
    %v712 = vmul.f32 %v664, %v696
    %v713 = vmul.f32 %v665, %v697
    %v714 = vmul.f32 %v666, %v698
    %v715 = vmul.f32 %v667, %v699
    %v716 = vmul.f32 %v668, %v700
    %v717 = vmul.f32 %v669, %v701
    %v718 = vmul.f32 %v670, %v702
    %v719 = vmul.f32 %v671, %v703
    %v720 = vmul.f32 %v672, %v704
    %v721 = vld [vmem:[%s3] sm:$0x1]
    %v723 = vlaneseq
    %v724 = vshrl.u32 %v723, 7
    %v725 = vsub.s32 0, %v724
    %v726 = vrot.slane %v721, %v725
    %v728 = vmul.f32 %v705, %v726
    %v729 = vmul.f32 %v706, %v726
    %v730 = vmul.f32 %v707, %v726
    %v731 = vmul.f32 %v708, %v726
    %v732 = vmul.f32 %v709, %v726
    %v733 = vmul.f32 %v710, %v726
    %v734 = vmul.f32 %v711, %v726
    %v735 = vmul.f32 %v712, %v726
    %v736 = vmul.f32 %v713, %v726
    %v737 = vmul.f32 %v714, %v726
    %v738 = vmul.f32 %v715, %v726
    %v739 = vmul.f32 %v716, %v726
    %v740 = vmul.f32 %v717, %v726
    %v741 = vmul.f32 %v718, %v726
    %v742 = vmul.f32 %v719, %v726
    %v743 = vmul.f32 %v720, %v726
    %v744 = vld [vmem:[%s4] sm:$0x1]
    %v746 = vlaneseq
    %v747 = vshrl.u32 %v746, 7
    %v748 = vsub.s32 0, %v747
    %v749 = vrot.slane %v744, %v748
    %v751 = vadd.f32 %v728, %v749
    %v752 = vadd.f32 %v729, %v749
    %v753 = vadd.f32 %v730, %v749
    %v754 = vadd.f32 %v731, %v749
    %v755 = vadd.f32 %v732, %v749
    %v756 = vadd.f32 %v733, %v749
    %v757 = vadd.f32 %v734, %v749
    %v758 = vadd.f32 %v735, %v749
    %v759 = vadd.f32 %v736, %v749
    %v760 = vadd.f32 %v737, %v749
    %v761 = vadd.f32 %v738, %v749
    %v762 = vadd.f32 %v739, %v749
    %v763 = vadd.f32 %v740, %v749
    %v764 = vadd.f32 %v741, %v749
    %v765 = vadd.f32 %v742, %v749
    %v766 = vadd.f32 %v743, %v749
    %v767 = vld [vmem:[#allocation7] sm:$0xff]
    %v768 = vld [vmem:[#allocation7 + $0x8] sm:$0xff]
    %v769 = vld [vmem:[#allocation7 + $0x10] sm:$0xff]
    %v770 = vld [vmem:[#allocation7 + $0x18] sm:$0xff]
    %v771 = vld [vmem:[#allocation7 + $0x20] sm:$0xff]
    %v772 = vld [vmem:[#allocation7 + $0x28] sm:$0xff]
    %v773 = vld [vmem:[#allocation7 + $0x30] sm:$0xff]
    %v774 = vld [vmem:[#allocation7 + $0x38] sm:$0xff]
    %v775 = vld [vmem:[#allocation7 + $0x40] sm:$0xff]
    %v776 = vld [vmem:[#allocation7 + $0x48] sm:$0xff]
    %v777 = vld [vmem:[#allocation7 + $0x50] sm:$0xff]
    %v778 = vld [vmem:[#allocation7 + $0x58] sm:$0xff]
    %v779 = vld [vmem:[#allocation7 + $0x60] sm:$0xff]
    %v780 = vld [vmem:[#allocation7 + $0x68] sm:$0xff]
    %v781 = vld [vmem:[#allocation7 + $0x70] sm:$0xff]
    %v782 = vld [vmem:[#allocation7 + $0x78] sm:$0xff]
    %v783 = vld [vmem:[%s6] sm:$0x1]
    %v785 = vlaneseq
    %v786 = vshrl.u32 %v785, 7
    %v787 = vsub.s32 0, %v786
    %v788 = vrot.slane %v783, %v787
    %790 = vmatprep.subr.mxu0 0.0
    %791 = vmatpush1.msra.mxu0 %v767
    %792 = vmatprep.subr.mxu0 0.0
    %793 = vmatpush1.msra.mxu0 %v768
    %794 = vmatprep.subr.mxu0 0.0
    %795 = vmatpush1.msra.mxu0 %v769
    %796 = vmatprep.subr.mxu0 0.0
    %797 = vmatpush1.msra.mxu0 %v770
    %798 = vmatprep.subr.mxu0 0.0
    %799 = vmatpush1.msra.mxu0 %v771
    %800 = vmatprep.subr.mxu0 0.0
    %801 = vmatpush1.msra.mxu0 %v772
    %802 = vmatprep.subr.mxu0 0.0
    %803 = vmatpush1.msra.mxu0 %v773
    %804 = vmatprep.subr.mxu0 0.0
    %805 = vmatpush1.msra.mxu0 %v774
    %806 = vmatprep.subr.mxu0 0.0
    %807 = vmatpush1.msra.mxu0 %v775
    %808 = vmatprep.subr.mxu0 0.0
    %809 = vmatpush1.msra.mxu0 %v776
    %810 = vmatprep.subr.mxu0 0.0
    %811 = vmatpush1.msra.mxu0 %v777
    %812 = vmatprep.subr.mxu0 0.0
    %813 = vmatpush1.msra.mxu0 %v778
    %814 = vmatprep.subr.mxu0 0.0
    %815 = vmatpush1.msra.mxu0 %v779
    %816 = vmatprep.subr.mxu0 0.0
    %817 = vmatpush1.msra.mxu0 %v780
    %818 = vmatprep.subr.mxu0 0.0
    %819 = vmatpush1.msra.mxu0 %v781
    %820 = vmatprep.subr.mxu0 0.0
    %821 = vmatpush1.msra.mxu0 %v782
    %822 = vmatprep.subr.mxu0 0.0
    %823 = vmatpush1.msra.mxu0 0.0
    %824 = vmatprep.subr.mxu0 0.0
    %825 = vmatpush1.msra.mxu0 0.0
    %826 = vmatprep.subr.mxu0 0.0
    %827 = vmatpush1.msra.mxu0 0.0
    %828 = vmatprep.subr.mxu0 0.0
    %829 = vmatpush1.msra.mxu0 0.0
    %830 = vmatprep.subr.mxu0 0.0
    %831 = vmatpush1.msra.mxu0 0.0
    %832 = vmatprep.subr.mxu0 0.0
    %833 = vmatpush1.msra.mxu0 0.0
    %834 = vmatprep.subr.mxu0 0.0
    %835 = vmatpush1.msra.mxu0 0.0
    %836 = vmatprep.subr.mxu0 0.0
    %837 = vmatpush1.msra.mxu0 0.0
    %838 = vmatprep.subr.mxu0 0.0
    %839 = vmatpush1.msra.mxu0 0.0
    %840 = vmatprep.subr.mxu0 0.0
    %841 = vmatpush1.msra.mxu0 0.0
    %842 = vmatprep.subr.mxu0 0.0
    %843 = vmatpush1.msra.mxu0 0.0
    %844 = vmatprep.subr.mxu0 0.0
    %845 = vmatpush1.msra.mxu0 0.0
    %846 = vmatprep.subr.mxu0 0.0
    %847 = vmatpush1.msra.mxu0 0.0
    %848 = vmatprep.subr.mxu0 0.0
    %849 = vmatpush1.msra.mxu0 0.0
    %850 = vmatprep.subr.mxu0 0.0
    %851 = vmatpush1.msra.mxu0 0.0
    %852 = vmatprep.subr.mxu0 0.0
    %853 = vmatpush1.msra.mxu0 0.0
    %854 = vmatprep.mubr.f32.mxu0 0.0
    %855 = vmatmul.mubr.f32.gmra.mrb[0].mxu0 %v751
    %v856 = vpop.f32.mrb[0].mxu0
    %v857 = vadd.f32 %v788, %v856
    %v858 = vpop.f32.mrb[0].mxu0
    %859 = vmatprep.mubr.f32.mxu0 0.0
    %860 = vmatmul.mubr.f32.gmra.mrb[0].mxu0 %v752
    %v861 = vpop.f32.mrb[0].mxu0
    %v862 = vadd.f32 %v788, %v861
    %v863 = vpop.f32.mrb[0].mxu0
    %864 = vmatprep.mubr.f32.mxu0 0.0
    %865 = vmatmul.mubr.f32.gmra.mrb[0].mxu0 %v753
    %v866 = vpop.f32.mrb[0].mxu0
    %v867 = vadd.f32 %v788, %v866
    %v868 = vpop.f32.mrb[0].mxu0
    %869 = vmatprep.mubr.f32.mxu0 0.0
    %870 = vmatmul.mubr.f32.gmra.mrb[0].mxu0 %v754
    %v871 = vpop.f32.mrb[0].mxu0
    %v872 = vadd.f32 %v788, %v871
    %v873 = vpop.f32.mrb[0].mxu0
    %874 = vmatprep.mubr.f32.mxu0 0.0
    %875 = vmatmul.mubr.f32.gmra.mrb[0].mxu0 %v755
    %v876 = vpop.f32.mrb[0].mxu0
    %v877 = vadd.f32 %v788, %v876
    %v878 = vpop.f32.mrb[0].mxu0
    %879 = vmatprep.mubr.f32.mxu0 0.0
    %880 = vmatmul.mubr.f32.gmra.mrb[0].mxu0 %v756
    %v881 = vpop.f32.mrb[0].mxu0
    %v882 = vadd.f32 %v788, %v881
    %v883 = vpop.f32.mrb[0].mxu0
    %884 = vmatprep.mubr.f32.mxu0 0.0
    %885 = vmatmul.mubr.f32.gmra.mrb[0].mxu0 %v757
    %v886 = vpop.f32.mrb[0].mxu0
    %v887 = vadd.f32 %v788, %v886
    %v888 = vpop.f32.mrb[0].mxu0
    %889 = vmatprep.mubr.f32.mxu0 0.0
    %890 = vmatmul.mubr.f32.gmra.mrb[0].mxu0 %v758
    %v891 = vpop.f32.mrb[0].mxu0
    %v892 = vadd.f32 %v788, %v891
    %v893 = vpop.f32.mrb[0].mxu0
    %894 = vmatprep.mubr.f32.mxu0 0.0
    %895 = vmatmul.mubr.f32.gmra.mrb[0].mxu0 %v759
    %v896 = vpop.f32.mrb[0].mxu0
    %v897 = vadd.f32 %v788, %v896
    %v898 = vpop.f32.mrb[0].mxu0
    %899 = vmatprep.mubr.f32.mxu0 0.0
    %900 = vmatmul.mubr.f32.gmra.mrb[0].mxu0 %v760
    %v901 = vpop.f32.mrb[0].mxu0
    %v902 = vadd.f32 %v788, %v901
    %v903 = vpop.f32.mrb[0].mxu0
    %904 = vmatprep.mubr.f32.mxu0 0.0
    %905 = vmatmul.mubr.f32.gmra.mrb[0].mxu0 %v761
    %v906 = vpop.f32.mrb[0].mxu0
    %v907 = vadd.f32 %v788, %v906
    %v908 = vpop.f32.mrb[0].mxu0
    %909 = vmatprep.mubr.f32.mxu0 0.0
    %910 = vmatmul.mubr.f32.gmra.mrb[0].mxu0 %v762
    %v911 = vpop.f32.mrb[0].mxu0
    %v912 = vadd.f32 %v788, %v911
    %v913 = vpop.f32.mrb[0].mxu0
    %914 = vmatprep.mubr.f32.mxu0 0.0
    %915 = vmatmul.mubr.f32.gmra.mrb[0].mxu0 %v763
    %v916 = vpop.f32.mrb[0].mxu0
    %v917 = vadd.f32 %v788, %v916
    %v918 = vpop.f32.mrb[0].mxu0
    %919 = vmatprep.mubr.f32.mxu0 0.0
    %920 = vmatmul.mubr.f32.gmra.mrb[0].mxu0 %v764
    %v921 = vpop.f32.mrb[0].mxu0
    %v922 = vadd.f32 %v788, %v921
    %v923 = vpop.f32.mrb[0].mxu0
    %924 = vmatprep.mubr.f32.mxu0 0.0
    %925 = vmatmul.mubr.f32.gmra.mrb[0].mxu0 %v765
    %v926 = vpop.f32.mrb[0].mxu0
    %v927 = vadd.f32 %v788, %v926
    %v928 = vpop.f32.mrb[0].mxu0
    %929 = vmatprep.mubr.f32.mxu0 0.0
    %930 = vmatmul.mubr.f32.gmra.mrb[0].mxu0 %v766
    %v931 = vpop.f32.mrb[0].mxu0
    %v932 = vadd.f32 %v788, %v931
    %v933 = vpop.f32.mrb[0].mxu0
    %934 = vdwg.mxu0
    %935 = vst [vmem:[#allocation8] sm:$0xff] %v857
    %936 = vst [vmem:[#allocation8 + $0x8] sm:$0xff] %v862
    %937 = vst [vmem:[#allocation8 + $0x10] sm:$0xff] %v867
    %938 = vst [vmem:[#allocation8 + $0x18] sm:$0xff] %v872
    %939 = vst [vmem:[#allocation8 + $0x20] sm:$0xff] %v877
    %940 = vst [vmem:[#allocation8 + $0x28] sm:$0xff] %v882
    %941 = vst [vmem:[#allocation8 + $0x30] sm:$0xff] %v887
    %942 = vst [vmem:[#allocation8 + $0x38] sm:$0xff] %v892
    %943 = vst [vmem:[#allocation8 + $0x40] sm:$0xff] %v897
    %944 = vst [vmem:[#allocation8 + $0x48] sm:$0xff] %v902
    %945 = vst [vmem:[#allocation8 + $0x50] sm:$0xff] %v907
    %946 = vst [vmem:[#allocation8 + $0x58] sm:$0xff] %v912
    %947 = vst [vmem:[#allocation8 + $0x60] sm:$0xff] %v917
    %948 = vst [vmem:[#allocation8 + $0x68] sm:$0xff] %v922
    %949 = vst [vmem:[#allocation8 + $0x70] sm:$0xff] %v927
    %950 = vst [vmem:[#allocation8 + $0x78] sm:$0xff] %v932
    // Predicated region
    $region42: #{tpu_custom_call.1} parent=1 // pred_check
      _
    $region43: #{tpu_custom_call.1} parent=1 // pred_check_branch
      %952 = sbr.rel (0) target = $region45
    $region44: #{tpu_custom_call.1} parent=1 // pred_region
      %s954 = ssub.s32 2048, 2048
      %955 = vsyncadd [#allocation4], %s954
      %s956 = sshll.u32 [#allocation8], 4
      %s957 = int_to_ptr.vmem [resolvable:$true] %s956
      %962 = dma.vmem_to_hbm [thread:$0]  %s957, 2048, %s7, [#allocation4], 128, 128, 8
    $region45: #{tpu_custom_call.1} parent=1 // pred_fallthru
      _
    // Predicated region
    $region46: #{tpu_custom_call.1} parent=1 // pred_check
      _
    $region47: #{tpu_custom_call.1} parent=1 // pred_check_branch
      %964 = sbr.rel (0) target = $region49
    $region48: #{tpu_custom_call.1} parent=1 // pred_region
      %965 = dma.done [#allocation4], 2048
    $region49: #{tpu_custom_call.1} parent=1 // pred_fallthru
      _
    %966 = vsyncpa [#allocation3], 1
    %967 = vsyncpa [#allocation6], 1
    %968 = vsyncpa [#allocation4], 1

</llo_original>
